<compile_context>
chip_gen: v6e
topology: v6e:2x2x1
jax: 0.10.0
libtpu: 0.0.40
codegen_flags: <defaults>
</compile_context>

<pallas_src>
import functools

import jax
import jax.numpy as jnp
import numpy as np
from jax import lax
from jax.experimental import pallas as pl
from jax.experimental.pallas import tpu as pltpu


def _hyperspherical_norm(y, eps, post_scale=None):
    # PyTorch semantics: y / (||y|| + eps).  Approx reciprocal runs on the EUP
    # (separate bundle slot), freeing VALU slots.  Optional post_scale is folded
    # into the (N, 1) reciprocal so it costs no extra (N, D) pass.
    norm = jnp.sqrt(jnp.sum(y * y, axis=-1, keepdims=True))
    inv = pl.reciprocal(norm + eps, approx=True)
    if post_scale is not None:
        inv = inv * post_scale
    return y * inv


def _token_mixer_kernel(x_ref, wqkv_ref, bqkv_ref, wo_ref, bo_ref, o_ref, *,
                        num_heads, head_dim, scale, eps, compute_dtype):
    D = num_heads * head_dim
    x = x_ref[0].astype(compute_dtype)                                  # (N, D)

    # Fused QKV projection: one wide MXU matmul with f32 accumulation.
    qkv = jnp.dot(x, wqkv_ref[...], preferred_element_type=jnp.float32)
    qkv = qkv + bqkv_ref[...]                                           # (N, 3D) f32

    # Hyperspherical norm over the FULL model dim (before the head split),
    # matching the PyTorch module.  Attention scale folded into q's reciprocal.
    q = _hyperspherical_norm(qkv[:, 0 * D:1 * D], eps,
                             post_scale=scale).astype(compute_dtype)
    k = _hyperspherical_norm(qkv[:, 1 * D:2 * D], eps).astype(compute_dtype)
    v = _hyperspherical_norm(qkv[:, 2 * D:3 * D], eps).astype(compute_dtype)

    # Per-head attention; heads are contiguous column slices (lane-aligned when
    # head_dim % 128 == 0).  Each head's output is projected by its row-slice of
    # Wo and accumulated -> identical to concat-then-matmul, no merged scratch.
    # TODO(synk): optional boolean `mask` (masked_fill with -finfo.max) not wired in;
    #             if added, restore the row-max subtraction before exp().
    # TODO(synk): for long sequences add a query-tile grid axis + online softmax
    #             (flash style) instead of a full (N, N) score matrix per head.
    out_acc = None
    for h in range(num_heads):
        lo = h * head_dim
        hi = lo + head_dim
        qh = q[:, lo:hi]
        kh = k[:, lo:hi]
        vh = v[:, lo:hi]
        # q_h @ k_h^T via dot_general (contract last dims) -> no explicit transpose.
        s = lax.dot_general(qh, kh, (((1,), (1,)), ((), ())),
                            preferred_element_type=jnp.float32)         # (N, N) f32
        # |s| <= scale < 1 because q and k are unit-norm over the full model dim
        # (hyperspherical norm) and scale is already folded into q, so exp() is
        # numerically safe without the usual row-max subtraction.
        p = jnp.exp(s)
        inv_l = pl.reciprocal(jnp.sum(p, axis=-1, keepdims=True), approx=True)
        # Deferred softmax normalization: N*head_dim multiplies instead of N*N.
        oh = jnp.dot(p.astype(compute_dtype), vh,
                     preferred_element_type=jnp.float32) * inv_l        # (N, hd) f32
        partial = jnp.dot(oh.astype(compute_dtype), wo_ref[lo:hi, :],
                          preferred_element_type=jnp.float32)           # (N, D) f32
        out_acc = partial if out_acc is None else out_acc + partial

    out = out_acc + bo_ref[...]
    o_ref[0] = _hyperspherical_norm(out, eps).astype(o_ref.dtype)


def token_mixer(x, params, *, num_heads, eps=1e-5, compute_dtype=jnp.bfloat16):
    """x: (B, N, D) float32. params: dict of (D, D) weights and (1, D) biases."""
    B, N, D = x.shape
    assert D % num_heads == 0
    head_dim = D // num_heads
    scale = head_dim ** (-0.5)

    # Fuse Q/K/V projections into a single (D, 3D) weight (one MXU matmul, one
    # weight DMA stream); cast weights to the MXU compute dtype (halves DMA bytes).
    # Biases stay f32 (added to the f32 accumulator).
    wqkv = jnp.concatenate([params["wq"], params["wk"], params["wv"]],
                           axis=1).astype(compute_dtype)                # (D, 3D)
    bqkv = jnp.concatenate([params["bq"], params["bk"], params["bv"]],
                           axis=1).astype(jnp.float32)                  # (1, 3D)
    wo = params["wo"].astype(compute_dtype)                             # (D, D)
    bo = params["bo"].astype(jnp.float32)                               # (1, D)

    kernel = functools.partial(
        _token_mixer_kernel, num_heads=num_heads, head_dim=head_dim,
        scale=scale, eps=eps, compute_dtype=compute_dtype)

    x_spec = pl.BlockSpec((1, N, D), lambda b: (b, 0, 0))
    # TODO(synk): on v7x (64 MiB VMEM) single-buffer the constant weight blocks
    #             (pipeline_mode=pl.Buffered(1); index_map is constant over the grid)
    #             or K-tile/stream them when D is large.
    wqkv_spec = pl.BlockSpec((D, 3 * D), lambda b: (0, 0))
    bqkv_spec = pl.BlockSpec((1, 3 * D), lambda b: (0, 0))
    wo_spec = pl.BlockSpec((D, D), lambda b: (0, 0))
    bo_spec = pl.BlockSpec((1, D), lambda b: (0, 0))

    return pl.pallas_call(
        kernel,
        out_shape=jax.ShapeDtypeStruct((B, N, D), x.dtype),
        grid_spec=pltpu.PrefetchScalarGridSpec(
            num_scalar_prefetch=0,
            grid=(B,),
            in_specs=[x_spec, wqkv_spec, bqkv_spec, wo_spec, bo_spec],
            out_specs=x_spec,
            scratch_shapes=[],
        ),
        compiler_params=pltpu.CompilerParams(
            # Batch axis is independent -> megacore can split it across TensorCores.
            dimension_semantics=("parallel",),
            # Explicit scoped-VMEM budget with headroom under v7x's 64 MiB physical
            # (default scoped limits are 16/32 MiB on v5e/v6e); the working set here
            # (bf16 weights + full-sequence activations + one (N, N) score tile)
            # is far smaller.
            vmem_limit_bytes=48 * 1024 * 1024,
        ),
    )(x, wqkv, bqkv, wo, bo)


def token_mixer_reference(x, params, *, num_heads, eps=1e-5):
    """Pure-JAX f32 reference mirroring the PyTorch forward."""
    B, N, D = x.shape
    head_dim = D // num_heads
    scale = head_dim ** (-0.5)

    def proj_norm(w, b):
        y = x @ w + b
        n = jnp.linalg.norm(y, axis=-1, keepdims=True)
        return y / (n + eps)

    q = proj_norm(params["wq"], params["bq"])
    k = proj_norm(params["wk"], params["bk"])
    v = proj_norm(params["wv"], params["bv"])

    def split(t):  # (B, N, D) -> (B, H, N, hd)
        return t.reshape(B, N, num_heads, head_dim).transpose(0, 2, 1, 3)

    qh, kh, vh = split(q), split(k), split(v)
    dots = jnp.einsum("bhqd,bhkd->bhqk", qh, kh) * scale
    attn = jax.nn.softmax(dots, axis=-1)
    out = jnp.einsum("bhqk,bhkd->bhqd", attn, vh)
    out = out.transpose(0, 2, 1, 3).reshape(B, N, D)
    out = out @ params["wo"] + params["bo"]
    n = jnp.linalg.norm(out, axis=-1, keepdims=True)
    return out / (n + eps)


def init_params(key, dim):
    """Deterministic synthetic init (shapes match nn.Linear(dim, dim) x 4)."""
    ks = jax.random.split(key, 8)
    s = 1.0 / np.sqrt(dim)

    def lin(kw, kb):
        w = jax.random.uniform(kw, (dim, dim), jnp.float32, -s, s)
        b = jax.random.uniform(kb, (1, dim), jnp.float32, -s, s)
        return w, b

    wq, bq = lin(ks[0], ks[1])
    wk, bk = lin(ks[2], ks[3])
    wv, bv = lin(ks[4], ks[5])
    wo, bo = lin(ks[6], ks[7])
    return dict(wq=wq, bq=bq, wk=wk, bk=bk, wv=wv, bv=bv, wo=wo, bo=bo)


if __name__ == "__main__":
    # Small but fully aligned config: dim=256 (multiple of 128), num_heads=2 so
    # head_dim=128 (every per-head slice is an unmasked full lane tile), seq=32
    # (multiple of 16 for bf16 sublane packing), batch=2.
    B, N, D, H = 2, 32, 256, 2
    key = jax.random.PRNGKey(0)
    kx, kp = jax.random.split(key)
    x = jax.random.normal(kx, (B, N, D), jnp.float32)
    params = init_params(kp, D)

    out = token_mixer(x, params, num_heads=H)
    out = jax.block_until_ready(out)

    # bf16 MXU operands + approx EUP reciprocals -> loosened tolerance vs f32 ref.
    ref = token_mixer_reference(x, params, num_heads=H)
    np.testing.assert_allclose(np.asarray(out), np.asarray(ref), rtol=3e-2, atol=3e-2)

    print("KERNEL_OK")
</pallas_src>

<mosaic_0001>
module attributes {stable_mosaic.version = 11 : i64} {
  func.func @_token_mixer_kernel(%arg0: i32, %arg1: memref<1x32x256xf32, #tpu.memory_space<vmem>>, %arg2: memref<256x768xbf16, #tpu.memory_space<vmem>>, %arg3: memref<1x768xf32, #tpu.memory_space<vmem>>, %arg4: memref<256x256xbf16, #tpu.memory_space<vmem>>, %arg5: memref<1x256xf32, #tpu.memory_space<vmem>>, %arg6: memref<1x32x256xf32, #tpu.memory_space<vmem>>) attributes {dimension_semantics = [#tpu.dimension_semantics<parallel>], iteration_bounds = array<i64: 2>, scalar_prefetch = 0 : i64, scratch_operands = 0 : i64, tpu.core_type = #tpu.core_type<tc>, window_params = [{transform_indices = @transform_0, window_bounds = array<i64: 1, 32, 256>}, {pipeline_mode = #tpu.pipeline_mode<synchronous>, transform_indices = @transform_1, window_bounds = array<i64: 256, 768>}, {pipeline_mode = #tpu.pipeline_mode<synchronous>, transform_indices = @transform_2, window_bounds = array<i64: 1, 768>}, {pipeline_mode = #tpu.pipeline_mode<synchronous>, transform_indices = @transform_3, window_bounds = array<i64: 256, 256>}, {pipeline_mode = #tpu.pipeline_mode<synchronous>, transform_indices = @transform_4, window_bounds = array<i64: 1, 256>}, {transform_indices = @transform_5, window_bounds = array<i64: 1, 32, 256>}]} {
    %c0 = arith.constant 0 : index
    %c0_0 = arith.constant 0 : index
    %c0_1 = arith.constant 0 : index
    %0 = vector.load %arg1[%c0, %c0_0, %c0_1] : memref<1x32x256xf32, #tpu.memory_space<vmem>>, vector<1x32x256xf32>
    %1 = vector.shape_cast %0 : vector<1x32x256xf32> to vector<32x256xf32>
    %2 = arith.truncf %1 : vector<32x256xf32> to vector<32x256xbf16>
    %c0_2 = arith.constant 0 : index
    %c0_3 = arith.constant 0 : index
    %3 = vector.load %arg2[%c0_2, %c0_3] : memref<256x768xbf16, #tpu.memory_space<vmem>>, vector<256x768xbf16>
    %cst = arith.constant dense<0.000000e+00> : vector<32x768xf32>
    %4 = tpu.matmul %2, %3, %cst {dimension_numbers = #tpu.dot_dimension_numbers<[1], [0], [0], [1], [0, 0, 1, 1], [], []>} : vector<32x256xbf16>, vector<256x768xbf16>, vector<32x768xf32> -> vector<32x768xf32>
    %c0_4 = arith.constant 0 : index
    %c0_5 = arith.constant 0 : index
    %5 = vector.load %arg3[%c0_4, %c0_5] : memref<1x768xf32, #tpu.memory_space<vmem>>, vector<1x768xf32>
    %6 = vector.broadcast %5 : vector<1x768xf32> to vector<32x768xf32>
    %7 = arith.addf %4, %6 : vector<32x768xf32>
    %8 = vector.extract_strided_slice %7 {offsets = [0, 0], sizes = [32, 256], strides = [1, 1]} : vector<32x768xf32> to vector<32x256xf32>
    %9 = arith.mulf %8, %8 : vector<32x256xf32>
    %cst_6 = arith.constant dense<0.000000e+00> : vector<32xf32>
    %10 = vector.multi_reduction <add>, %9, %cst_6 [1] : vector<32x256xf32> to vector<32xf32>
    %11 = vector.shape_cast %10 : vector<32xf32> to vector<32x1xf32>
    %12 = math.sqrt %11 : vector<32x1xf32>
    %cst_7 = arith.constant 9.99999974E-6 : f32
    %13 = vector.broadcast %cst_7 : f32 to vector<32x1xf32>
    %14 = arith.addf %12, %13 : vector<32x1xf32>
    %15 = tpu.reciprocal %14 {approx = true} : vector<32x1xf32> -> vector<32x1xf32>
    %cst_8 = arith.constant 0.0883883461 : f32
    %16 = vector.broadcast %cst_8 : f32 to vector<32x1xf32>
    %17 = arith.mulf %15, %16 : vector<32x1xf32>
    %18 = vector.broadcast %17 : vector<32x1xf32> to vector<32x256xf32>
    %19 = arith.mulf %8, %18 : vector<32x256xf32>
    %20 = arith.truncf %19 : vector<32x256xf32> to vector<32x256xbf16>
    %21 = vector.extract_strided_slice %7 {offsets = [0, 256], sizes = [32, 256], strides = [1, 1]} : vector<32x768xf32> to vector<32x256xf32>
    %22 = arith.mulf %21, %21 : vector<32x256xf32>
    %cst_9 = arith.constant dense<0.000000e+00> : vector<32xf32>
    %23 = vector.multi_reduction <add>, %22, %cst_9 [1] : vector<32x256xf32> to vector<32xf32>
    %24 = vector.shape_cast %23 : vector<32xf32> to vector<32x1xf32>
    %25 = math.sqrt %24 : vector<32x1xf32>
    %cst_10 = arith.constant 9.99999974E-6 : f32
    %26 = vector.broadcast %cst_10 : f32 to vector<32x1xf32>
    %27 = arith.addf %25, %26 : vector<32x1xf32>
    %28 = tpu.reciprocal %27 {approx = true} : vector<32x1xf32> -> vector<32x1xf32>
    %29 = vector.broadcast %28 : vector<32x1xf32> to vector<32x256xf32>
    %30 = arith.mulf %21, %29 : vector<32x256xf32>
    %31 = arith.truncf %30 : vector<32x256xf32> to vector<32x256xbf16>
    %32 = vector.extract_strided_slice %7 {offsets = [0, 512], sizes = [32, 256], strides = [1, 1]} : vector<32x768xf32> to vector<32x256xf32>
    %33 = arith.mulf %32, %32 : vector<32x256xf32>
    %cst_11 = arith.constant dense<0.000000e+00> : vector<32xf32>
    %34 = vector.multi_reduction <add>, %33, %cst_11 [1] : vector<32x256xf32> to vector<32xf32>
    %35 = vector.shape_cast %34 : vector<32xf32> to vector<32x1xf32>
    %36 = math.sqrt %35 : vector<32x1xf32>
    %cst_12 = arith.constant 9.99999974E-6 : f32
    %37 = vector.broadcast %cst_12 : f32 to vector<32x1xf32>
    %38 = arith.addf %36, %37 : vector<32x1xf32>
    %39 = tpu.reciprocal %38 {approx = true} : vector<32x1xf32> -> vector<32x1xf32>
    %40 = vector.broadcast %39 : vector<32x1xf32> to vector<32x256xf32>
    %41 = arith.mulf %32, %40 : vector<32x256xf32>
    %42 = arith.truncf %41 : vector<32x256xf32> to vector<32x256xbf16>
    %43 = vector.extract_strided_slice %20 {offsets = [0, 0], sizes = [32, 128], strides = [1, 1]} : vector<32x256xbf16> to vector<32x128xbf16>
    %44 = vector.extract_strided_slice %31 {offsets = [0, 0], sizes = [32, 128], strides = [1, 1]} : vector<32x256xbf16> to vector<32x128xbf16>
    %45 = vector.extract_strided_slice %42 {offsets = [0, 0], sizes = [32, 128], strides = [1, 1]} : vector<32x256xbf16> to vector<32x128xbf16>
    %cst_13 = arith.constant dense<0.000000e+00> : vector<32x32xf32>
    %46 = tpu.matmul %43, %44, %cst_13 {dimension_numbers = #tpu.dot_dimension_numbers<[1], [1], [0], [0], [0, 0, 1, 0], [], []>} : vector<32x128xbf16>, vector<32x128xbf16>, vector<32x32xf32> -> vector<32x32xf32>
    %47 = math.exp %46 : vector<32x32xf32>
    %cst_14 = arith.constant dense<0.000000e+00> : vector<32xf32>
    %48 = vector.multi_reduction <add>, %47, %cst_14 [1] : vector<32x32xf32> to vector<32xf32>
    %49 = vector.shape_cast %48 : vector<32xf32> to vector<32x1xf32>
    %50 = tpu.reciprocal %49 {approx = true} : vector<32x1xf32> -> vector<32x1xf32>
    %51 = arith.truncf %47 : vector<32x32xf32> to vector<32x32xbf16>
    %cst_15 = arith.constant dense<0.000000e+00> : vector<32x128xf32>
    %52 = tpu.matmul %51, %45, %cst_15 {dimension_numbers = #tpu.dot_dimension_numbers<[1], [0], [0], [1], [0, 0, 1, 1], [], []>} : vector<32x32xbf16>, vector<32x128xbf16>, vector<32x128xf32> -> vector<32x128xf32>
    %53 = vector.broadcast %50 : vector<32x1xf32> to vector<32x128xf32>
    %54 = arith.mulf %52, %53 : vector<32x128xf32>
    %55 = arith.truncf %54 : vector<32x128xf32> to vector<32x128xbf16>
    %c0_16 = arith.constant 0 : index
    %c0_17 = arith.constant 0 : index
    %56 = vector.load %arg4[%c0_16, %c0_17] : memref<256x256xbf16, #tpu.memory_space<vmem>>, vector<128x256xbf16>
    %cst_18 = arith.constant dense<0.000000e+00> : vector<32x256xf32>
    %57 = tpu.matmul %55, %56, %cst_18 {dimension_numbers = #tpu.dot_dimension_numbers<[1], [0], [0], [1], [0, 0, 1, 1], [], []>} : vector<32x128xbf16>, vector<128x256xbf16>, vector<32x256xf32> -> vector<32x256xf32>
    %58 = vector.extract_strided_slice %20 {offsets = [0, 128], sizes = [32, 128], strides = [1, 1]} : vector<32x256xbf16> to vector<32x128xbf16>
    %59 = vector.extract_strided_slice %31 {offsets = [0, 128], sizes = [32, 128], strides = [1, 1]} : vector<32x256xbf16> to vector<32x128xbf16>
    %60 = vector.extract_strided_slice %42 {offsets = [0, 128], sizes = [32, 128], strides = [1, 1]} : vector<32x256xbf16> to vector<32x128xbf16>
    %cst_19 = arith.constant dense<0.000000e+00> : vector<32x32xf32>
    %61 = tpu.matmul %58, %59, %cst_19 {dimension_numbers = #tpu.dot_dimension_numbers<[1], [1], [0], [0], [0, 0, 1, 0], [], []>} : vector<32x128xbf16>, vector<32x128xbf16>, vector<32x32xf32> -> vector<32x32xf32>
    %62 = math.exp %61 : vector<32x32xf32>
    %cst_20 = arith.constant dense<0.000000e+00> : vector<32xf32>
    %63 = vector.multi_reduction <add>, %62, %cst_20 [1] : vector<32x32xf32> to vector<32xf32>
    %64 = vector.shape_cast %63 : vector<32xf32> to vector<32x1xf32>
    %65 = tpu.reciprocal %64 {approx = true} : vector<32x1xf32> -> vector<32x1xf32>
    %66 = arith.truncf %62 : vector<32x32xf32> to vector<32x32xbf16>
    %cst_21 = arith.constant dense<0.000000e+00> : vector<32x128xf32>
    %67 = tpu.matmul %66, %60, %cst_21 {dimension_numbers = #tpu.dot_dimension_numbers<[1], [0], [0], [1], [0, 0, 1, 1], [], []>} : vector<32x32xbf16>, vector<32x128xbf16>, vector<32x128xf32> -> vector<32x128xf32>
    %68 = vector.broadcast %65 : vector<32x1xf32> to vector<32x128xf32>
    %69 = arith.mulf %67, %68 : vector<32x128xf32>
    %70 = arith.truncf %69 : vector<32x128xf32> to vector<32x128xbf16>
    %c128 = arith.constant 128 : index
    %c0_22 = arith.constant 0 : index
    %71 = vector.load %arg4[%c128, %c0_22] : memref<256x256xbf16, #tpu.memory_space<vmem>>, vector<128x256xbf16>
    %cst_23 = arith.constant dense<0.000000e+00> : vector<32x256xf32>
    %72 = tpu.matmul %70, %71, %cst_23 {dimension_numbers = #tpu.dot_dimension_numbers<[1], [0], [0], [1], [0, 0, 1, 1], [], []>} : vector<32x128xbf16>, vector<128x256xbf16>, vector<32x256xf32> -> vector<32x256xf32>
    %73 = arith.addf %57, %72 : vector<32x256xf32>
    %c0_24 = arith.constant 0 : index
    %c0_25 = arith.constant 0 : index
    %74 = vector.load %arg5[%c0_24, %c0_25] : memref<1x256xf32, #tpu.memory_space<vmem>>, vector<1x256xf32>
    %75 = vector.broadcast %74 : vector<1x256xf32> to vector<32x256xf32>
    %76 = arith.addf %73, %75 : vector<32x256xf32>
    %77 = arith.mulf %76, %76 : vector<32x256xf32>
    %cst_26 = arith.constant dense<0.000000e+00> : vector<32xf32>
    %78 = vector.multi_reduction <add>, %77, %cst_26 [1] : vector<32x256xf32> to vector<32xf32>
    %79 = vector.shape_cast %78 : vector<32xf32> to vector<32x1xf32>
    %80 = math.sqrt %79 : vector<32x1xf32>
    %cst_27 = arith.constant 9.99999974E-6 : f32
    %81 = vector.broadcast %cst_27 : f32 to vector<32x1xf32>
    %82 = arith.addf %80, %81 : vector<32x1xf32>
    %83 = tpu.reciprocal %82 {approx = true} : vector<32x1xf32> -> vector<32x1xf32>
    %84 = vector.broadcast %83 : vector<32x1xf32> to vector<32x256xf32>
    %85 = arith.mulf %76, %84 : vector<32x256xf32>
    %c0_28 = arith.constant 0 : index
    %c0_29 = arith.constant 0 : index
    %c0_30 = arith.constant 0 : index
    %86 = vector.load %arg6[%c0_28, %c0_29, %c0_30] : memref<1x32x256xf32, #tpu.memory_space<vmem>>, vector<1x32x256xf32>
    %87 = vector.shape_cast %86 : vector<1x32x256xf32> to vector<32x256xf32>
    %88 = vector.shape_cast %85 : vector<32x256xf32> to vector<1x32x256xf32>
    tpu.vector_store %arg6[%c0_28, %c0_29, %c0_30], %88 {strides = array<i32>} : memref<1x32x256xf32, #tpu.memory_space<vmem>>, vector<1x32x256xf32>,
    return
  }
  func.func @transform_0(%arg0: i32) -> (i32, i32, i32) {
    %c0_i32 = arith.constant 0 : i32
    %c0_i32_0 = arith.constant 0 : i32
    %c0_i32_1 = arith.constant 0 : i32
    return %arg0, %c0_i32, %c0_i32_0 : i32, i32, i32
  }
  func.func @transform_1(%arg0: i32) -> (i32, i32) {
    %c0_i32 = arith.constant 0 : i32
    %c0_i32_0 = arith.constant 0 : i32
    %c0_i32_1 = arith.constant 0 : i32
    return %c0_i32, %c0_i32_0 : i32, i32
  }
  func.func @transform_2(%arg0: i32) -> (i32, i32) {
    %c0_i32 = arith.constant 0 : i32
    %c0_i32_0 = arith.constant 0 : i32
    %c0_i32_1 = arith.constant 0 : i32
    return %c0_i32, %c0_i32_0 : i32, i32
  }
  func.func @transform_3(%arg0: i32) -> (i32, i32) {
    %c0_i32 = arith.constant 0 : i32
    %c0_i32_0 = arith.constant 0 : i32
    %c0_i32_1 = arith.constant 0 : i32
    return %c0_i32, %c0_i32_0 : i32, i32
  }
  func.func @transform_4(%arg0: i32) -> (i32, i32) {
    %c0_i32 = arith.constant 0 : i32
    %c0_i32_0 = arith.constant 0 : i32
    %c0_i32_1 = arith.constant 0 : i32
    return %c0_i32, %c0_i32_0 : i32, i32
  }
  func.func @transform_5(%arg0: i32) -> (i32, i32, i32) {
    %c0_i32 = arith.constant 0 : i32
    %c0_i32_0 = arith.constant 0 : i32
    %c0_i32_1 = arith.constant 0 : i32
    return %arg0, %c0_i32, %c0_i32_0 : i32, i32, i32
  }
}

</mosaic_0001>

<llo_original>
// kernel: tpu_custom_call.1
$region0: #{tpu_custom_call.1}
  #allocation0 [shape = 'u32[]', space=smem, size = 0x4, offset = 0x4, fixed_abs, tag = 'smem constant byte address 0x4 - core index']
  #allocation1 [shape = 'u32[144,128]{1,0:T(1,128)}', space=vmem, size = 0x12000, scoped, tag = 'internal scratch']
  %s0 = inlined_call_operand.hbm [shape: f32[2,32,256], index: 0, kind: input, shape index: {}]
  %s1 = inlined_call_operand.hbm [shape: bf16[256,768], index: 1, kind: input, shape index: {}]
  %s2 = inlined_call_operand.hbm [shape: f32[1,768], index: 2, kind: input, shape index: {}]
  %s3 = inlined_call_operand.hbm [shape: bf16[256,256], index: 3, kind: input, shape index: {}]
  %s4 = inlined_call_operand.vmem [shape: f32[1,256], index: 4, kind: input, shape index: {}]
  %s5 = inlined_call_operand.hbm [shape: f32[2,32,256], index: 5, kind: output, shape index: {}]
  %s6 = sld [smem:[#allocation0]]
  $region69: #{tpu_custom_call.1} parent=0
    _
  %s8 = ssub.s32 1, %s6
  %s9 = scalar_select 0, %s8, %s6
  $region1: #{tpu_custom_call.1} parent=0
    #allocation2 [shape = 'u8[65536]{0}', space=vmem, size = 0x10000, scoped, tag = 'input window, operand 0']
    #allocation3 [shape = 's32[2]{0}', space=sflag, size = 0x8, scoped, tag = 'scoped memory for tpu_custom_call.1']
    #allocation4 [shape = 's32[2]{0}', space=sflag, size = 0x8, scoped, tag = 'scoped memory for tpu_custom_call.1']
    #allocation5 [shape = 'u8[393216]{0}', space=vmem, size = 0x60000, scoped, tag = 'input window, operand 1, single buffered']
    #allocation6 [shape = 's32[1]{0}', space=sflag, size = 0x4, scoped, tag = 'scoped memory for tpu_custom_call.1']
    #allocation7 [shape = 'u8[3072]{0}', space=vmem, size = 0xc00, scoped, tag = 'input window, operand 2, single buffered']
    #allocation8 [shape = 'u8[131072]{0}', space=vmem, size = 0x20000, scoped, tag = 'input window, operand 3, single buffered']
    #allocation9 [shape = 's32[1]{0}', space=sflag, size = 0x4, scoped, tag = 'scoped memory for tpu_custom_call.1']
    #allocation10 [shape = 'u8[65536]{0}', space=vmem, size = 0x10000, scoped, tag = 'output window, operand 0']
    %10 = vsyncpa [#allocation3], 0
    %s11 = scalar_lea.sflag [#allocation3], 1
    %12 = vsyncpa %s11, 0
    %13 = vsyncpa [#allocation6], 0
    %14 = vsyncpa [#allocation9], 0
    %15 = vsyncpa [#allocation4], 0
    %s16 = scalar_lea.sflag [#allocation4], 1
    %17 = vsyncpa %s16, 0
    loop: start=0, step=1, limit=4
    $region2: #{tpu_custom_call.1} parent=1 // loop_pre_header
      _
    $region3: #{tpu_custom_call.1} parent=1 // loop_header
      %s19 = sphi 0, %s23
      %p20 = scmp.ge.s32.totalorder %s19, 4
      %s29 = sphi 0, %s31
      %s32 = sphi 0, %s29
      %s33 = sphi 0, %s32
      %s49 = sphi 0, %s33
      %s53 = sphi 0, %s53
      %s55 = sphi 0, %s53
      %s56 = sphi 0, %s55
      %s70 = sphi 0, %s56
      %s74 = sphi 0, %s74
      %s76 = sphi 0, %s74
      %s77 = sphi 0, %s76
      %s91 = sphi 0, %s77
      %s95 = sphi 0, %s95
      %s97 = sphi 0, %s95
      %s98 = sphi 0, %s97
      %s112 = sphi 0, %s98
      %s116 = sphi 0, %s116
      %s118 = sphi 0, %s116
      %s119 = sphi 0, %s118
      %s133 = sphi 0, %s119
      %s139 = sphi 0, %s141
      %s142 = sphi 0, %s139
      %s143 = sphi 0, %s142
      %s159 = sphi 0, %s143
    $region4: #{tpu_custom_call.1} parent=1 // loop_header_branch
      %22 = sbr.rel (%p20) target = $region8
    $region5: #{tpu_custom_call.1} parent=1 // loop_body
      %s24 = ssub.s32 %s19, 1
      %s25 = ssub.s32 %s19, 2
      %s26 = sadd.s32 %s19, 1
      %s27 = ssub.s32 %s19, %s26
      %p28 = scmp.eq.s32.totalorder %s27, 0
      %s30 = sadd.s32 %s29, 1
      %s31 = scalar_select %p28, %s29, %s30
      %p34 = pneg %p28
      %p35 = scmp.eq.s32.totalorder %s19, 1
      %p36 = por %p34, %p35
      %p37 = scmp.ne.s32.totalorder %s29, %s32
      %p38 = scmp.eq.s32.totalorder %s19, 0
      %p39 = por %p37, %p38
      %p40 = scmp.ne.s32.totalorder %s29, %s32
      %p41 = scmp.eq.s32.totalorder %s24, 1
      %p42 = por %p40, %p41
      %p43 = scmp.ne.s32.totalorder %s32, %s33
      %p44 = scmp.eq.s32.totalorder %s24, 0
      %p45 = por %p43, %p44
      %p46 = scmp.ne.s32.totalorder %s32, %s33
      %p47 = scmp.eq.s32.totalorder %s25, 1
      %p48 = por %p46, %p47
      %p50 = scmp.ne.s32.totalorder %s33, %s49
      %p51 = scmp.eq.s32.totalorder %s25, 0
      %p52 = por %p50, %p51
      %s54 = sadd.s32 %s53, 1
      %p57 = scmp.eq.s32.totalorder %s19, 1
      %p58 = scmp.ne.s32.totalorder %s53, %s55
      %p59 = scmp.eq.s32.totalorder %s19, 0
      %p60 = por %p58, %p59
      %p61 = scmp.ne.s32.totalorder %s53, %s55
      %p62 = scmp.eq.s32.totalorder %s24, 1
      %p63 = por %p61, %p62
      %p64 = scmp.ne.s32.totalorder %s55, %s56
      %p65 = scmp.eq.s32.totalorder %s24, 0
      %p66 = por %p64, %p65
      %p67 = scmp.ne.s32.totalorder %s55, %s56
      %p68 = scmp.eq.s32.totalorder %s25, 1
      %p69 = por %p67, %p68
      %p71 = scmp.ne.s32.totalorder %s56, %s70
      %p72 = scmp.eq.s32.totalorder %s25, 0
      %p73 = por %p71, %p72
      %s75 = sadd.s32 %s74, 1
      %p78 = scmp.eq.s32.totalorder %s19, 1
      %p79 = scmp.ne.s32.totalorder %s74, %s76
      %p80 = scmp.eq.s32.totalorder %s19, 0
      %p81 = por %p79, %p80
      %p82 = scmp.ne.s32.totalorder %s74, %s76
      %p83 = scmp.eq.s32.totalorder %s24, 1
      %p84 = por %p82, %p83
      %p85 = scmp.ne.s32.totalorder %s76, %s77
      %p86 = scmp.eq.s32.totalorder %s24, 0
      %p87 = por %p85, %p86
      %p88 = scmp.ne.s32.totalorder %s76, %s77
      %p89 = scmp.eq.s32.totalorder %s25, 1
      %p90 = por %p88, %p89
      %p92 = scmp.ne.s32.totalorder %s77, %s91
      %p93 = scmp.eq.s32.totalorder %s25, 0
      %p94 = por %p92, %p93
      %s96 = sadd.s32 %s95, 1
      %p99 = scmp.eq.s32.totalorder %s19, 1
      %p100 = scmp.ne.s32.totalorder %s95, %s97
      %p101 = scmp.eq.s32.totalorder %s19, 0
      %p102 = por %p100, %p101
      %p103 = scmp.ne.s32.totalorder %s95, %s97
      %p104 = scmp.eq.s32.totalorder %s24, 1
      %p105 = por %p103, %p104
      %p106 = scmp.ne.s32.totalorder %s97, %s98
      %p107 = scmp.eq.s32.totalorder %s24, 0
      %p108 = por %p106, %p107
      %p109 = scmp.ne.s32.totalorder %s97, %s98
      %p110 = scmp.eq.s32.totalorder %s25, 1
      %p111 = por %p109, %p110
      %p113 = scmp.ne.s32.totalorder %s98, %s112
      %p114 = scmp.eq.s32.totalorder %s25, 0
      %p115 = por %p113, %p114
      %s117 = sadd.s32 %s116, 1
      %p120 = scmp.eq.s32.totalorder %s19, 1
      %p121 = scmp.ne.s32.totalorder %s116, %s118
      %p122 = scmp.eq.s32.totalorder %s19, 0
      %p123 = por %p121, %p122
      %p124 = scmp.ne.s32.totalorder %s116, %s118
      %p125 = scmp.eq.s32.totalorder %s24, 1
      %p126 = por %p124, %p125
      %p127 = scmp.ne.s32.totalorder %s118, %s119
      %p128 = scmp.eq.s32.totalorder %s24, 0
      %p129 = por %p127, %p128
      %p130 = scmp.ne.s32.totalorder %s118, %s119
      %p131 = scmp.eq.s32.totalorder %s25, 1
      %p132 = por %p130, %p131
      %p134 = scmp.ne.s32.totalorder %s119, %s133
      %p135 = scmp.eq.s32.totalorder %s25, 0
      %p136 = por %p134, %p135
      %s137 = ssub.s32 %s19, %s26
      %p138 = scmp.eq.s32.totalorder %s137, 0
      %s140 = sadd.s32 %s139, 1
      %s141 = scalar_select %p138, %s139, %s140
      %p144 = pneg %p138
      %p145 = scmp.eq.s32.totalorder %s19, 1
      %p146 = por %p144, %p145
      %p147 = scmp.ne.s32.totalorder %s139, %s142
      %p148 = scmp.eq.s32.totalorder %s19, 0
      %p149 = por %p147, %p148
      %p150 = scmp.ne.s32.totalorder %s139, %s142
      %p151 = scmp.eq.s32.totalorder %s24, 1
      %p152 = por %p150, %p151
      %p153 = scmp.ne.s32.totalorder %s142, %s143
      %p154 = scmp.eq.s32.totalorder %s24, 0
      %p155 = por %p153, %p154
      %p156 = scmp.ne.s32.totalorder %s142, %s143
      %p157 = scmp.eq.s32.totalorder %s25, 1
      %p158 = por %p156, %p157
      %p160 = scmp.ne.s32.totalorder %s143, %s159
      %p161 = scmp.eq.s32.totalorder %s25, 0
      %p162 = por %p160, %p161
      %p163 = scmp.le.s32.totalorder 1, %s19
      %p164 = scmp.lt.s32.totalorder %s19, 3
      %p165 = pnand %p163, %p164
      %p166 = pneg %p165
      // Predicated region
      $region9: #{tpu_custom_call.1} parent=5 // pred_check
        _
      $region10: #{tpu_custom_call.1} parent=5 // pred_check_branch
        %168 = sbr.rel (%p165) target = $region12
      $region11: #{tpu_custom_call.1} parent=5 // pred_region
        %s169 = ssub.s32 %s19, 1
        // Predicated region
        $region13: #{tpu_custom_call.1} parent=11 // pred_check
          %p170 = pneg %p66
        $region14: #{tpu_custom_call.1} parent=11 // pred_check_branch
          %172 = sbr.rel (%p170) target = $region16
        $region15: #{tpu_custom_call.1} parent=11 // pred_region
          %s174 = ssub.s32 12288, 12288
          %175 = vsyncadd [#allocation6], %s174
          %s176 = sshll.u32 [#allocation5], 4
          %s177 = int_to_ptr.vmem [resolvable:$true] %s176
          %182 = dma.hbm_to_vmem [thread:$0]  %s1, 12288, %s177, [#allocation6], 384, 384, 24
        $region16: #{tpu_custom_call.1} parent=11 // pred_fallthru
          _
        // Predicated region
        $region17: #{tpu_custom_call.1} parent=11 // pred_check
          %p183 = pneg %p87
        $region18: #{tpu_custom_call.1} parent=11 // pred_check_branch
          %185 = sbr.rel (%p183) target = $region20
        $region19: #{tpu_custom_call.1} parent=11 // pred_region
          %s187 = ssub.s32 96, 96
          %188 = vsyncadd [#allocation6], %s187
          %s190 = sshll.u32 [#allocation7], 4
          %s191 = int_to_ptr.vmem [resolvable:$true] %s190
          %193 = dma.hbm_to_vmem [thread:$0]  %s2, 96, %s191, [#allocation6]
        $region20: #{tpu_custom_call.1} parent=11 // pred_fallthru
          _
        // Predicated region
        $region21: #{tpu_custom_call.1} parent=11 // pred_check
          %p194 = pneg %p108
        $region22: #{tpu_custom_call.1} parent=11 // pred_check_branch
          %196 = sbr.rel (%p194) target = $region24
        $region23: #{tpu_custom_call.1} parent=11 // pred_region
          %s198 = ssub.s32 4096, 4096
          %199 = vsyncadd [#allocation9], %s198
          %s200 = sshll.u32 [#allocation8], 4
          %s201 = int_to_ptr.vmem [resolvable:$true] %s200
          %206 = dma.hbm_to_vmem [thread:$0]  %s3, 4096, %s201, [#allocation9], 128, 128, 8
        $region24: #{tpu_custom_call.1} parent=11 // pred_fallthru
          _
        // Predicated region
        $region25: #{tpu_custom_call.1} parent=11 // pred_check
          %p207 = pneg %p129
        $region26: #{tpu_custom_call.1} parent=11 // pred_check_branch
          %209 = sbr.rel (%p207) target = $region28
        $region27: #{tpu_custom_call.1} parent=11 // pred_region
          _
        $region28: #{tpu_custom_call.1} parent=11 // pred_fallthru
          _
      $region12: #{tpu_custom_call.1} parent=5 // pred_fallthru
        _
      %p210 = scmp.lt.s32.totalorder %s19, 2
      // Predicated region
      $region29: #{tpu_custom_call.1} parent=5 // pred_check
        %p211 = pneg %p210
      $region30: #{tpu_custom_call.1} parent=5 // pred_check_branch
        %213 = sbr.rel (%p211) target = $region32
      $region31: #{tpu_custom_call.1} parent=5 // pred_region
        // Predicated region
        $region33: #{tpu_custom_call.1} parent=31 // pred_check
          %p214 = pneg %p39
        $region34: #{tpu_custom_call.1} parent=31 // pred_check_branch
          %216 = sbr.rel (%p214) target = $region36
        $region35: #{tpu_custom_call.1} parent=31 // pred_region
          %s217 = sand.u32 %s29, 1
          %s218 = scalar_lea.sflag [#allocation3], %s217
          %s219 = sand.u32 %s29, 1
          %s220 = smul.addr %s219, 64
          %s221 = scalar_lea.vmem [#allocation2], %s220
          %s223 = ssub.s32 1024, 1024
          %224 = vsyncadd %s218, %s223
          %s225 = smul.addr %s19, 8
          %s226 = smul.addr %s225, 128
          %s227 = scalar_lea.hbm %s0, %s226
          %s228 = sshll.u32 %s221, 4
          %s229 = int_to_ptr.vmem [resolvable:$true] %s228
          %234 = dma.hbm_to_vmem [thread:$0]  %s227, 1024, %s229, %s218, 256, 256, 16
        $region36: #{tpu_custom_call.1} parent=31 // pred_fallthru
          _
      $region32: #{tpu_custom_call.1} parent=5 // pred_fallthru
        _
      %p235 = scmp.le.s32.totalorder 1, %s19
      %p236 = scmp.lt.s32.totalorder %s19, 3
      %p237 = pnand %p235, %p236
      %p238 = pneg %p237
      // Predicated region
      $region37: #{tpu_custom_call.1} parent=5 // pred_check
        _
      $region38: #{tpu_custom_call.1} parent=5 // pred_check_branch
        %240 = sbr.rel (%p237) target = $region40
      $region39: #{tpu_custom_call.1} parent=5 // pred_region
        %s241 = ssub.s32 %s19, 1
        %s242 = sand.u32 %s32, 1
        %s243 = scalar_lea.sflag [#allocation3], %s242
        %s244 = sand.u32 %s32, 1
        %s245 = smul.addr %s244, 64
        %s246 = scalar_lea.vmem [#allocation2], %s245
        // Predicated region
        $region41: #{tpu_custom_call.1} parent=39 // pred_check
          %p247 = pneg %p45
        $region42: #{tpu_custom_call.1} parent=39 // pred_check_branch
          %249 = sbr.rel (%p247) target = $region44
        $region43: #{tpu_custom_call.1} parent=39 // pred_region
          %250 = dma.done %s243, 1024
        $region44: #{tpu_custom_call.1} parent=39 // pred_fallthru
          _
        // Predicated region
        $region45: #{tpu_custom_call.1} parent=39 // pred_check
          %p251 = pneg %p66
        $region46: #{tpu_custom_call.1} parent=39 // pred_check_branch
          %253 = sbr.rel (%p251) target = $region48
        $region47: #{tpu_custom_call.1} parent=39 // pred_region
          %254 = dma.done [#allocation6], 12288
        $region48: #{tpu_custom_call.1} parent=39 // pred_fallthru
          _
        // Predicated region
        $region49: #{tpu_custom_call.1} parent=39 // pred_check
          %p255 = pneg %p87
        $region50: #{tpu_custom_call.1} parent=39 // pred_check_branch
          %257 = sbr.rel (%p255) target = $region52
        $region51: #{tpu_custom_call.1} parent=39 // pred_region
          %258 = dma.done [#allocation6], 96
        $region52: #{tpu_custom_call.1} parent=39 // pred_fallthru
          _
        // Predicated region
        $region53: #{tpu_custom_call.1} parent=39 // pred_check
          %p259 = pneg %p108
        $region54: #{tpu_custom_call.1} parent=39 // pred_check_branch
          %261 = sbr.rel (%p259) target = $region56
        $region55: #{tpu_custom_call.1} parent=39 // pred_region
          %262 = dma.done [#allocation9], 4096
        $region56: #{tpu_custom_call.1} parent=39 // pred_fallthru
          _
        %s263 = sand.u32 %s32, 1
        %s264 = scalar_lea.sflag [#allocation3], %s263
        %s265 = sand.u32 %s32, 1
        %s266 = smul.addr %s265, 64
        %s267 = scalar_lea.vmem [#allocation2], %s266
        %p268 = pneg %p45
        %p269 = pneg %p42
        %p270 = pneg %p66
        %p271 = pneg %p63
        %p272 = pneg %p87
        %p273 = pneg %p84
        %p274 = pneg %p108
        %p275 = pneg %p105
        %p276 = pneg %p129
        %p277 = pneg %p126
        %p278 = pneg %p155
        %p279 = pneg %p152
        %s280 = sand.u32 %s142, 1
        %s281 = scalar_lea.sflag [#allocation4], %s280
        %s282 = sand.u32 %s142, 1
        %s283 = smul.addr %s282, 64
        %s284 = scalar_lea.vmem [#allocation10], %s283
        %v286 = vld [vmem:[%s246] sm:$0xff]
        %v287 = vld [vmem:[%s246 + $0x8] sm:$0xff]
        %v288 = vld [vmem:[%s246 + $0x10] sm:$0xff]
        %v289 = vld [vmem:[%s246 + $0x18] sm:$0xff]
        %v290 = vld [vmem:[%s246 + $0x20] sm:$0xff]
        %v291 = vld [vmem:[%s246 + $0x28] sm:$0xff]
        %v292 = vld [vmem:[%s246 + $0x30] sm:$0xff]
        %v293 = vld [vmem:[%s246 + $0x38] sm:$0xff]
        %v294 = vpack.c.bf16 %v288, %v286
        %v295 = vpack.c.bf16 %v289, %v287
        %v296 = vpack.c.bf16 %v292, %v290
        %v297 = vpack.c.bf16 %v293, %v291
        %v298 = vld [vmem:[#allocation5] sm:$0xff]
        %v299 = vld [vmem:[#allocation5 + $0x8] sm:$0xff]
        %v300 = vld [vmem:[#allocation5 + $0x10] sm:$0xff]
        %v301 = vld [vmem:[#allocation5 + $0x18] sm:$0xff]
        %v302 = vld [vmem:[#allocation5 + $0x20] sm:$0xff]
        %v303 = vld [vmem:[#allocation5 + $0x28] sm:$0xff]
        %v304 = vld [vmem:[#allocation5 + $0x30] sm:$0xff]
        %v305 = vld [vmem:[#allocation5 + $0x38] sm:$0xff]
        %v306 = vld [vmem:[#allocation5 + $0x40] sm:$0xff]
        %v307 = vld [vmem:[#allocation5 + $0x48] sm:$0xff]
        %v308 = vld [vmem:[#allocation5 + $0x50] sm:$0xff]
        %v309 = vld [vmem:[#allocation5 + $0x58] sm:$0xff]
        %v310 = vld [vmem:[#allocation5 + $0x60] sm:$0xff]
        %v311 = vld [vmem:[#allocation5 + $0x68] sm:$0xff]
        %v312 = vld [vmem:[#allocation5 + $0x70] sm:$0xff]
        %v313 = vld [vmem:[#allocation5 + $0x78] sm:$0xff]
        %v314 = vld [vmem:[#allocation5 + $0x80] sm:$0xff]
        %v315 = vld [vmem:[#allocation5 + $0x88] sm:$0xff]
        %v316 = vld [vmem:[#allocation5 + $0x90] sm:$0xff]
        %v317 = vld [vmem:[#allocation5 + $0x98] sm:$0xff]
        %v318 = vld [vmem:[#allocation5 + $0xa0] sm:$0xff]
        %v319 = vld [vmem:[#allocation5 + $0xa8] sm:$0xff]
        %v320 = vld [vmem:[#allocation5 + $0xb0] sm:$0xff]
        %v321 = vld [vmem:[#allocation5 + $0xb8] sm:$0xff]
        %v322 = vld [vmem:[#allocation5 + $0xc0] sm:$0xff]
        %v323 = vld [vmem:[#allocation5 + $0xc8] sm:$0xff]
        %v324 = vld [vmem:[#allocation5 + $0xd0] sm:$0xff]
        %v325 = vld [vmem:[#allocation5 + $0xd8] sm:$0xff]
        %v326 = vld [vmem:[#allocation5 + $0xe0] sm:$0xff]
        %v327 = vld [vmem:[#allocation5 + $0xe8] sm:$0xff]
        %v328 = vld [vmem:[#allocation5 + $0xf0] sm:$0xff]
        %v329 = vld [vmem:[#allocation5 + $0xf8] sm:$0xff]
        %v330 = vld [vmem:[#allocation5 + $0x100] sm:$0xff]
        %v331 = vld [vmem:[#allocation5 + $0x108] sm:$0xff]
        %v332 = vld [vmem:[#allocation5 + $0x110] sm:$0xff]
        %v333 = vld [vmem:[#allocation5 + $0x118] sm:$0xff]
        %v334 = vld [vmem:[#allocation5 + $0x120] sm:$0xff]
        %v335 = vld [vmem:[#allocation5 + $0x128] sm:$0xff]
        %v336 = vld [vmem:[#allocation5 + $0x130] sm:$0xff]
        %v337 = vld [vmem:[#allocation5 + $0x138] sm:$0xff]
        %v338 = vld [vmem:[#allocation5 + $0x140] sm:$0xff]
        %v339 = vld [vmem:[#allocation5 + $0x148] sm:$0xff]
        %v340 = vld [vmem:[#allocation5 + $0x150] sm:$0xff]
        %v341 = vld [vmem:[#allocation5 + $0x158] sm:$0xff]
        %v342 = vld [vmem:[#allocation5 + $0x160] sm:$0xff]
        %v343 = vld [vmem:[#allocation5 + $0x168] sm:$0xff]
        %v344 = vld [vmem:[#allocation5 + $0x170] sm:$0xff]
        %v345 = vld [vmem:[#allocation5 + $0x178] sm:$0xff]
        %v346 = vld [vmem:[#allocation5 + $0x180] sm:$0xff]
        %v347 = vld [vmem:[#allocation5 + $0x188] sm:$0xff]
        %v348 = vld [vmem:[#allocation5 + $0x190] sm:$0xff]
        %v349 = vld [vmem:[#allocation5 + $0x198] sm:$0xff]
        %v350 = vld [vmem:[#allocation5 + $0x1a0] sm:$0xff]
        %v351 = vld [vmem:[#allocation5 + $0x1a8] sm:$0xff]
        %v352 = vld [vmem:[#allocation5 + $0x1b0] sm:$0xff]
        %v353 = vld [vmem:[#allocation5 + $0x1b8] sm:$0xff]
        %v354 = vld [vmem:[#allocation5 + $0x1c0] sm:$0xff]
        %v355 = vld [vmem:[#allocation5 + $0x1c8] sm:$0xff]
        %v356 = vld [vmem:[#allocation5 + $0x1d0] sm:$0xff]
        %v357 = vld [vmem:[#allocation5 + $0x1d8] sm:$0xff]
        %v358 = vld [vmem:[#allocation5 + $0x1e0] sm:$0xff]
        %v359 = vld [vmem:[#allocation5 + $0x1e8] sm:$0xff]
        %v360 = vld [vmem:[#allocation5 + $0x1f0] sm:$0xff]
        %v361 = vld [vmem:[#allocation5 + $0x1f8] sm:$0xff]
        %v362 = vld [vmem:[#allocation5 + $0x200] sm:$0xff]
        %v363 = vld [vmem:[#allocation5 + $0x208] sm:$0xff]
        %v364 = vld [vmem:[#allocation5 + $0x210] sm:$0xff]
        %v365 = vld [vmem:[#allocation5 + $0x218] sm:$0xff]
        %v366 = vld [vmem:[#allocation5 + $0x220] sm:$0xff]
        %v367 = vld [vmem:[#allocation5 + $0x228] sm:$0xff]
        %v368 = vld [vmem:[#allocation5 + $0x230] sm:$0xff]
        %v369 = vld [vmem:[#allocation5 + $0x238] sm:$0xff]
        %v370 = vld [vmem:[#allocation5 + $0x240] sm:$0xff]
        %v371 = vld [vmem:[#allocation5 + $0x248] sm:$0xff]
        %v372 = vld [vmem:[#allocation5 + $0x250] sm:$0xff]
        %v373 = vld [vmem:[#allocation5 + $0x258] sm:$0xff]
        %v374 = vld [vmem:[#allocation5 + $0x260] sm:$0xff]
        %v375 = vld [vmem:[#allocation5 + $0x268] sm:$0xff]
        %v376 = vld [vmem:[#allocation5 + $0x270] sm:$0xff]
        %v377 = vld [vmem:[#allocation5 + $0x278] sm:$0xff]
        %v378 = vld [vmem:[#allocation5 + $0x280] sm:$0xff]
        %v379 = vld [vmem:[#allocation5 + $0x288] sm:$0xff]
        %v380 = vld [vmem:[#allocation5 + $0x290] sm:$0xff]
        %v381 = vld [vmem:[#allocation5 + $0x298] sm:$0xff]
        %v382 = vld [vmem:[#allocation5 + $0x2a0] sm:$0xff]
        %v383 = vld [vmem:[#allocation5 + $0x2a8] sm:$0xff]
        %v384 = vld [vmem:[#allocation5 + $0x2b0] sm:$0xff]
        %v385 = vld [vmem:[#allocation5 + $0x2b8] sm:$0xff]
        %v386 = vld [vmem:[#allocation5 + $0x2c0] sm:$0xff]
        %v387 = vld [vmem:[#allocation5 + $0x2c8] sm:$0xff]
        %v388 = vld [vmem:[#allocation5 + $0x2d0] sm:$0xff]
        %v389 = vld [vmem:[#allocation5 + $0x2d8] sm:$0xff]
        %v390 = vld [vmem:[#allocation5 + $0x2e0] sm:$0xff]
        %v391 = vld [vmem:[#allocation5 + $0x2e8] sm:$0xff]
        %v392 = vld [vmem:[#allocation5 + $0x2f0] sm:$0xff]
        %v393 = vld [vmem:[#allocation5 + $0x2f8] sm:$0xff]
        %v394 = vld [vmem:[#allocation7] sm:$0x3f]
        %v396 = vlaneseq
        %v397 = vshrl.u32 %v396, 7
        %v398 = vsub.s32 0, %v397
        %v399 = vrot.slane %v394, %v398
        %v400 = vlaneseq
        %v401 = vshrl.u32 %v400, 7
        %v402 = vsub.s32 1, %v401
        %v403 = vrot.slane %v394, %v402
        %v404 = vlaneseq
        %v405 = vshrl.u32 %v404, 7
        %v406 = vsub.s32 2, %v405
        %v407 = vrot.slane %v394, %v406
        %v408 = vlaneseq
        %v409 = vshrl.u32 %v408, 7
        %v410 = vsub.s32 3, %v409
        %v411 = vrot.slane %v394, %v410
        %v412 = vlaneseq
        %v413 = vshrl.u32 %v412, 7
        %v414 = vsub.s32 4, %v413
        %v415 = vrot.slane %v394, %v414
        %v416 = vlaneseq
        %v417 = vshrl.u32 %v416, 7
        %v418 = vsub.s32 5, %v417
        %v419 = vrot.slane %v394, %v418
        %v522 = vunpack.c.l.b16 %v298
        %v523 = vunpack.c.h.b16 %v298
        %v524 = vunpack.c.l.b16 %v299
        %v525 = vunpack.c.h.b16 %v299
        %v526 = vunpack.c.l.b16 %v300
        %v527 = vunpack.c.h.b16 %v300
        %v528 = vunpack.c.l.b16 %v301
        %v529 = vunpack.c.h.b16 %v301
        %v530 = vunpack.c.l.b16 %v302
        %v531 = vunpack.c.h.b16 %v302
        %v532 = vunpack.c.l.b16 %v303
        %v533 = vunpack.c.h.b16 %v303
        %v534 = vunpack.c.l.b16 %v304
        %v535 = vunpack.c.h.b16 %v304
        %v536 = vunpack.c.l.b16 %v305
        %v537 = vunpack.c.h.b16 %v305
        %v538 = vunpack.c.l.b16 %v306
        %v539 = vunpack.c.h.b16 %v306
        %v540 = vunpack.c.l.b16 %v307
        %v541 = vunpack.c.h.b16 %v307
        %v542 = vunpack.c.l.b16 %v308
        %v543 = vunpack.c.h.b16 %v308
        %v544 = vunpack.c.l.b16 %v309
        %v545 = vunpack.c.h.b16 %v309
        %v546 = vunpack.c.l.b16 %v310
        %v547 = vunpack.c.h.b16 %v310
        %v548 = vunpack.c.l.b16 %v311
        %v549 = vunpack.c.h.b16 %v311
        %v550 = vunpack.c.l.b16 %v312
        %v551 = vunpack.c.h.b16 %v312
        %v552 = vunpack.c.l.b16 %v313
        %v553 = vunpack.c.h.b16 %v313
        %v554 = vunpack.c.l.b16 %v314
        %v555 = vunpack.c.h.b16 %v314
        %v556 = vunpack.c.l.b16 %v315
        %v557 = vunpack.c.h.b16 %v315
        %v558 = vunpack.c.l.b16 %v316
        %v559 = vunpack.c.h.b16 %v316
        %v560 = vunpack.c.l.b16 %v317
        %v561 = vunpack.c.h.b16 %v317
        %v562 = vunpack.c.l.b16 %v318
        %v563 = vunpack.c.h.b16 %v318
        %v564 = vunpack.c.l.b16 %v319
        %v565 = vunpack.c.h.b16 %v319
        %v566 = vunpack.c.l.b16 %v320
        %v567 = vunpack.c.h.b16 %v320
        %v568 = vunpack.c.l.b16 %v321
        %v569 = vunpack.c.h.b16 %v321
        %v570 = vunpack.c.l.b16 %v322
        %v571 = vunpack.c.h.b16 %v322
        %v572 = vunpack.c.l.b16 %v323
        %v573 = vunpack.c.h.b16 %v323
        %v574 = vunpack.c.l.b16 %v324
        %v575 = vunpack.c.h.b16 %v324
        %v576 = vunpack.c.l.b16 %v325
        %v577 = vunpack.c.h.b16 %v325
        %v578 = vunpack.c.l.b16 %v326
        %v579 = vunpack.c.h.b16 %v326
        %v580 = vunpack.c.l.b16 %v327
        %v581 = vunpack.c.h.b16 %v327
        %v582 = vunpack.c.l.b16 %v328
        %v583 = vunpack.c.h.b16 %v328
        %v584 = vunpack.c.l.b16 %v329
        %v585 = vunpack.c.h.b16 %v329
        %v586 = vunpack.c.l.b16 %v330
        %v587 = vunpack.c.h.b16 %v330
        %v588 = vunpack.c.l.b16 %v331
        %v589 = vunpack.c.h.b16 %v331
        %v590 = vunpack.c.l.b16 %v332
        %v591 = vunpack.c.h.b16 %v332
        %v592 = vunpack.c.l.b16 %v333
        %v593 = vunpack.c.h.b16 %v333
        %v594 = vunpack.c.l.b16 %v334
        %v595 = vunpack.c.h.b16 %v334
        %v596 = vunpack.c.l.b16 %v335
        %v597 = vunpack.c.h.b16 %v335
        %v598 = vunpack.c.l.b16 %v336
        %v599 = vunpack.c.h.b16 %v336
        %v600 = vunpack.c.l.b16 %v337
        %v601 = vunpack.c.h.b16 %v337
        %v602 = vunpack.c.l.b16 %v338
        %v603 = vunpack.c.h.b16 %v338
        %v604 = vunpack.c.l.b16 %v339
        %v605 = vunpack.c.h.b16 %v339
        %v606 = vunpack.c.l.b16 %v340
        %v607 = vunpack.c.h.b16 %v340
        %v608 = vunpack.c.l.b16 %v341
        %v609 = vunpack.c.h.b16 %v341
        %v610 = vunpack.c.l.b16 %v342
        %v611 = vunpack.c.h.b16 %v342
        %v612 = vunpack.c.l.b16 %v343
        %v613 = vunpack.c.h.b16 %v343
        %v614 = vunpack.c.l.b16 %v344
        %v615 = vunpack.c.h.b16 %v344
        %v616 = vunpack.c.l.b16 %v345
        %v617 = vunpack.c.h.b16 %v345
        %v618 = vunpack.c.l.b16 %v346
        %v619 = vunpack.c.h.b16 %v346
        %v620 = vunpack.c.l.b16 %v347
        %v621 = vunpack.c.h.b16 %v347
        %v622 = vunpack.c.l.b16 %v348
        %v623 = vunpack.c.h.b16 %v348
        %v624 = vunpack.c.l.b16 %v349
        %v625 = vunpack.c.h.b16 %v349
        %v626 = vunpack.c.l.b16 %v350
        %v627 = vunpack.c.h.b16 %v350
        %v628 = vunpack.c.l.b16 %v351
        %v629 = vunpack.c.h.b16 %v351
        %v630 = vunpack.c.l.b16 %v352
        %v631 = vunpack.c.h.b16 %v352
        %v632 = vunpack.c.l.b16 %v353
        %v633 = vunpack.c.h.b16 %v353
        %v634 = vunpack.c.l.b16 %v354
        %v635 = vunpack.c.h.b16 %v354
        %v636 = vunpack.c.l.b16 %v355
        %v637 = vunpack.c.h.b16 %v355
        %v638 = vunpack.c.l.b16 %v356
        %v639 = vunpack.c.h.b16 %v356
        %v640 = vunpack.c.l.b16 %v357
        %v641 = vunpack.c.h.b16 %v357
        %v642 = vunpack.c.l.b16 %v358
        %v643 = vunpack.c.h.b16 %v358
        %v644 = vunpack.c.l.b16 %v359
        %v645 = vunpack.c.h.b16 %v359
        %v646 = vunpack.c.l.b16 %v360
        %v647 = vunpack.c.h.b16 %v360
        %v648 = vunpack.c.l.b16 %v361
        %v649 = vunpack.c.h.b16 %v361
        %v650 = vunpack.c.l.b16 %v362
        %v651 = vunpack.c.h.b16 %v362
        %v652 = vunpack.c.l.b16 %v363
        %v653 = vunpack.c.h.b16 %v363
        %v654 = vunpack.c.l.b16 %v364
        %v655 = vunpack.c.h.b16 %v364
        %v656 = vunpack.c.l.b16 %v365
        %v657 = vunpack.c.h.b16 %v365
        %v658 = vunpack.c.l.b16 %v366
        %v659 = vunpack.c.h.b16 %v366
        %v660 = vunpack.c.l.b16 %v367
        %v661 = vunpack.c.h.b16 %v367
        %v662 = vunpack.c.l.b16 %v368
        %v663 = vunpack.c.h.b16 %v368
        %v664 = vunpack.c.l.b16 %v369
        %v665 = vunpack.c.h.b16 %v369
        %v666 = vunpack.c.l.b16 %v370
        %v667 = vunpack.c.h.b16 %v370
        %v668 = vunpack.c.l.b16 %v371
        %v669 = vunpack.c.h.b16 %v371
        %v670 = vunpack.c.l.b16 %v372
        %v671 = vunpack.c.h.b16 %v372
        %v672 = vunpack.c.l.b16 %v373
        %v673 = vunpack.c.h.b16 %v373
        %v674 = vunpack.c.l.b16 %v374
        %v675 = vunpack.c.h.b16 %v374
        %v676 = vunpack.c.l.b16 %v375
        %v677 = vunpack.c.h.b16 %v375
        %v678 = vunpack.c.l.b16 %v376
        %v679 = vunpack.c.h.b16 %v376
        %v680 = vunpack.c.l.b16 %v377
        %v681 = vunpack.c.h.b16 %v377
        %v682 = vunpack.c.l.b16 %v378
        %v683 = vunpack.c.h.b16 %v378
        %v684 = vunpack.c.l.b16 %v379
        %v685 = vunpack.c.h.b16 %v379
        %v686 = vunpack.c.l.b16 %v380
        %v687 = vunpack.c.h.b16 %v380
        %v688 = vunpack.c.l.b16 %v381
        %v689 = vunpack.c.h.b16 %v381
        %v690 = vunpack.c.l.b16 %v382
        %v691 = vunpack.c.h.b16 %v382
        %v692 = vunpack.c.l.b16 %v383
        %v693 = vunpack.c.h.b16 %v383
        %v694 = vunpack.c.l.b16 %v384
        %v695 = vunpack.c.h.b16 %v384
        %v696 = vunpack.c.l.b16 %v385
        %v697 = vunpack.c.h.b16 %v385
        %v698 = vunpack.c.l.b16 %v386
        %v699 = vunpack.c.h.b16 %v386
        %v700 = vunpack.c.l.b16 %v387
        %v701 = vunpack.c.h.b16 %v387
        %v702 = vunpack.c.l.b16 %v388
        %v703 = vunpack.c.h.b16 %v388
        %v704 = vunpack.c.l.b16 %v389
        %v705 = vunpack.c.h.b16 %v389
        %v706 = vunpack.c.l.b16 %v390
        %v707 = vunpack.c.h.b16 %v390
        %v708 = vunpack.c.l.b16 %v391
        %v709 = vunpack.c.h.b16 %v391
        %v710 = vunpack.c.l.b16 %v392
        %v711 = vunpack.c.h.b16 %v392
        %v712 = vunpack.c.l.b16 %v393
        %v713 = vunpack.c.h.b16 %v393
        %v714 = vpack.c.b16 %v528, %v522
        %v715 = vpack.c.b16 %v529, %v523
        %v716 = vpack.c.b16 %v530, %v524
        %v717 = vpack.c.b16 %v531, %v525
        %v718 = vpack.c.b16 %v532, %v526
        %v719 = vpack.c.b16 %v533, %v527
        %v720 = vpack.c.b16 %v540, %v534
        %v721 = vpack.c.b16 %v541, %v535
        %v722 = vpack.c.b16 %v542, %v536
        %v723 = vpack.c.b16 %v543, %v537
        %v724 = vpack.c.b16 %v544, %v538
        %v725 = vpack.c.b16 %v545, %v539
        %v726 = vpack.c.b16 %v552, %v546
        %v727 = vpack.c.b16 %v553, %v547
        %v728 = vpack.c.b16 %v554, %v548
        %v729 = vpack.c.b16 %v555, %v549
        %v730 = vpack.c.b16 %v556, %v550
        %v731 = vpack.c.b16 %v557, %v551
        %v732 = vpack.c.b16 %v564, %v558
        %v733 = vpack.c.b16 %v565, %v559
        %v734 = vpack.c.b16 %v566, %v560
        %v735 = vpack.c.b16 %v567, %v561
        %v736 = vpack.c.b16 %v568, %v562
        %v737 = vpack.c.b16 %v569, %v563
        %v738 = vpack.c.b16 %v576, %v570
        %v739 = vpack.c.b16 %v577, %v571
        %v740 = vpack.c.b16 %v578, %v572
        %v741 = vpack.c.b16 %v579, %v573
        %v742 = vpack.c.b16 %v580, %v574
        %v743 = vpack.c.b16 %v581, %v575
        %v744 = vpack.c.b16 %v588, %v582
        %v745 = vpack.c.b16 %v589, %v583
        %v746 = vpack.c.b16 %v590, %v584
        %v747 = vpack.c.b16 %v591, %v585
        %v748 = vpack.c.b16 %v592, %v586
        %v749 = vpack.c.b16 %v593, %v587
        %v750 = vpack.c.b16 %v600, %v594
        %v751 = vpack.c.b16 %v601, %v595
        %v752 = vpack.c.b16 %v602, %v596
        %v753 = vpack.c.b16 %v603, %v597
        %v754 = vpack.c.b16 %v604, %v598
        %v755 = vpack.c.b16 %v605, %v599
        %v756 = vpack.c.b16 %v612, %v606
        %v757 = vpack.c.b16 %v613, %v607
        %v758 = vpack.c.b16 %v614, %v608
        %v759 = vpack.c.b16 %v615, %v609
        %v760 = vpack.c.b16 %v616, %v610
        %v761 = vpack.c.b16 %v617, %v611
        %v762 = vpack.c.b16 %v624, %v618
        %v763 = vpack.c.b16 %v625, %v619
        %v764 = vpack.c.b16 %v626, %v620
        %v765 = vpack.c.b16 %v627, %v621
        %v766 = vpack.c.b16 %v628, %v622
        %v767 = vpack.c.b16 %v629, %v623
        %v768 = vpack.c.b16 %v636, %v630
        %v769 = vpack.c.b16 %v637, %v631
        %v770 = vpack.c.b16 %v638, %v632
        %v771 = vpack.c.b16 %v639, %v633
        %v772 = vpack.c.b16 %v640, %v634
        %v773 = vpack.c.b16 %v641, %v635
        %v774 = vpack.c.b16 %v648, %v642
        %v775 = vpack.c.b16 %v649, %v643
        %v776 = vpack.c.b16 %v650, %v644
        %v777 = vpack.c.b16 %v651, %v645
        %v778 = vpack.c.b16 %v652, %v646
        %v779 = vpack.c.b16 %v653, %v647
        %v780 = vpack.c.b16 %v660, %v654
        %v781 = vpack.c.b16 %v661, %v655
        %v782 = vpack.c.b16 %v662, %v656
        %v783 = vpack.c.b16 %v663, %v657
        %v784 = vpack.c.b16 %v664, %v658
        %v785 = vpack.c.b16 %v665, %v659
        %v786 = vpack.c.b16 %v672, %v666
        %v787 = vpack.c.b16 %v673, %v667
        %v788 = vpack.c.b16 %v674, %v668
        %v789 = vpack.c.b16 %v675, %v669
        %v790 = vpack.c.b16 %v676, %v670
        %v791 = vpack.c.b16 %v677, %v671
        %v792 = vpack.c.b16 %v684, %v678
        %v793 = vpack.c.b16 %v685, %v679
        %v794 = vpack.c.b16 %v686, %v680
        %v795 = vpack.c.b16 %v687, %v681
        %v796 = vpack.c.b16 %v688, %v682
        %v797 = vpack.c.b16 %v689, %v683
        %v798 = vpack.c.b16 %v696, %v690
        %v799 = vpack.c.b16 %v697, %v691
        %v800 = vpack.c.b16 %v698, %v692
        %v801 = vpack.c.b16 %v699, %v693
        %v802 = vpack.c.b16 %v700, %v694
        %v803 = vpack.c.b16 %v701, %v695
        %v804 = vpack.c.b16 %v708, %v702
        %v805 = vpack.c.b16 %v709, %v703
        %v806 = vpack.c.b16 %v710, %v704
        %v807 = vpack.c.b16 %v711, %v705
        %v808 = vpack.c.b16 %v712, %v706
        %v809 = vpack.c.b16 %v713, %v707
        %906 = vmatprep.subr.bf16.mxu0 %v757
        %907 = vmatpush1.bf16.msra.mxu0 %v756
        %908 = vmatprep.subr.bf16.mxu0 %v751
        %909 = vmatpush1.bf16.msra.mxu0 %v750
        %910 = vmatprep.subr.bf16.mxu0 %v745
        %911 = vmatpush1.bf16.msra.mxu0 %v744
        %912 = vmatprep.subr.bf16.mxu0 %v739
        %913 = vmatpush1.bf16.msra.mxu0 %v738
        %914 = vmatprep.subr.bf16.mxu0 %v733
        %915 = vmatpush1.bf16.msra.mxu0 %v732
        %916 = vmatprep.subr.bf16.mxu0 %v727
        %917 = vmatpush1.bf16.msra.mxu0 %v726
        %918 = vmatprep.subr.bf16.mxu0 %v721
        %919 = vmatpush1.bf16.msra.mxu0 %v720
        %920 = vmatprep.subr.bf16.mxu0 %v715
        %921 = vmatpush1.bf16.msra.mxu0 %v714
        %922 = vmatprep.subr.bf16.mxu0 %v805
        %923 = vmatpush2.bf16.msra.mxu0 %v804
        %924 = vmatprep.subr.bf16.mxu0 %v799
        %925 = vmatpush2.bf16.msra.mxu0 %v798
        %926 = vmatprep.subr.bf16.mxu0 %v793
        %927 = vmatpush2.bf16.msra.mxu0 %v792
        %928 = vmatprep.subr.bf16.mxu0 %v787
        %929 = vmatpush2.bf16.msra.mxu0 %v786
        %930 = vmatprep.subr.bf16.mxu0 %v781
        %931 = vmatpush2.bf16.msra.mxu0 %v780
        %932 = vmatprep.subr.bf16.mxu0 %v775
        %933 = vmatpush2.bf16.msra.mxu0 %v774
        %934 = vmatprep.subr.bf16.mxu0 %v769
        %935 = vmatpush2.bf16.msra.mxu0 %v768
        %936 = vmatprep.subr.bf16.mxu0 %v763
        %937 = vmatpush2.bf16.msra.mxu0 %v762
        %938 = vmatprep.mubr.bf16.mxu0 %v295
        %939 = vmatmul.mubr.bf16.gmra.mxu0 %v294
        %v940 = vpop.f32.mrf.mxu0
        %v941 = vadd.f32 %v399, %v940
        %v942 = vpop.f32.mrf.mxu0
        %v943 = vadd.f32 %v403, %v942
        %v944 = vpop.f32.mrf.mxu0
        %v945 = vadd.f32 %v399, %v944
        %v946 = vpop.f32.mrf.mxu0
        %v947 = vadd.f32 %v403, %v946
        %948 = vmatprep.mubr.bf16.mxu0 %v297
        %949 = vmatmul.mubr.bf16.gmra.mxu0 %v296
        %v950 = vpop.f32.mrf.mxu0
        %v951 = vadd.f32 %v399, %v950
        %v952 = vpop.f32.mrf.mxu0
        %v953 = vadd.f32 %v403, %v952
        %v954 = vpop.f32.mrf.mxu0
        %v955 = vadd.f32 %v399, %v954
        %v956 = vpop.f32.mrf.mxu0
        %v957 = vadd.f32 %v403, %v956
        %958 = vdwg.mxu0
        %959 = vmatprep.subr.bf16.mxu0 %v759
        %960 = vmatpush1.bf16.msra.mxu0 %v758
        %961 = vmatprep.subr.bf16.mxu0 %v753
        %962 = vmatpush1.bf16.msra.mxu0 %v752
        %963 = vmatprep.subr.bf16.mxu0 %v747
        %964 = vmatpush1.bf16.msra.mxu0 %v746
        %965 = vmatprep.subr.bf16.mxu0 %v741
        %966 = vmatpush1.bf16.msra.mxu0 %v740
        %967 = vmatprep.subr.bf16.mxu0 %v735
        %968 = vmatpush1.bf16.msra.mxu0 %v734
        %969 = vmatprep.subr.bf16.mxu0 %v729
        %970 = vmatpush1.bf16.msra.mxu0 %v728
        %971 = vmatprep.subr.bf16.mxu0 %v723
        %972 = vmatpush1.bf16.msra.mxu0 %v722
        %973 = vmatprep.subr.bf16.mxu0 %v717
        %974 = vmatpush1.bf16.msra.mxu0 %v716
        %975 = vmatprep.subr.bf16.mxu0 %v807
        %976 = vmatpush2.bf16.msra.mxu0 %v806
        %977 = vmatprep.subr.bf16.mxu0 %v801
        %978 = vmatpush2.bf16.msra.mxu0 %v800
        %979 = vmatprep.subr.bf16.mxu0 %v795
        %980 = vmatpush2.bf16.msra.mxu0 %v794
        %981 = vmatprep.subr.bf16.mxu0 %v789
        %982 = vmatpush2.bf16.msra.mxu0 %v788
        %983 = vmatprep.subr.bf16.mxu0 %v783
        %984 = vmatpush2.bf16.msra.mxu0 %v782
        %985 = vmatprep.subr.bf16.mxu0 %v777
        %986 = vmatpush2.bf16.msra.mxu0 %v776
        %987 = vmatprep.subr.bf16.mxu0 %v771
        %988 = vmatpush2.bf16.msra.mxu0 %v770
        %989 = vmatprep.subr.bf16.mxu0 %v765
        %990 = vmatpush2.bf16.msra.mxu0 %v764
        %991 = vmatprep.mubr.bf16.mxu0 %v295
        %992 = vmatmul.mubr.bf16.gmra.mxu0 %v294
        %v993 = vpop.f32.mrf.mxu0
        %v994 = vadd.f32 %v407, %v993
        %v995 = vpop.f32.mrf.mxu0
        %v996 = vadd.f32 %v411, %v995
        %v997 = vpop.f32.mrf.mxu0
        %v998 = vadd.f32 %v407, %v997
        %v999 = vpop.f32.mrf.mxu0
        %v1000 = vadd.f32 %v411, %v999
        %1001 = vmatprep.mubr.bf16.mxu0 %v297
        %1002 = vmatmul.mubr.bf16.gmra.mxu0 %v296
        %v1003 = vpop.f32.mrf.mxu0
        %v1004 = vadd.f32 %v407, %v1003
        %v1005 = vpop.f32.mrf.mxu0
        %v1006 = vadd.f32 %v411, %v1005
        %v1007 = vpop.f32.mrf.mxu0
        %v1008 = vadd.f32 %v407, %v1007
        %v1009 = vpop.f32.mrf.mxu0
        %v1010 = vadd.f32 %v411, %v1009
        %1011 = vdwg.mxu0
        %1012 = vmatprep.subr.bf16.mxu0 %v761
        %1013 = vmatpush1.bf16.msra.mxu0 %v760
        %1014 = vmatprep.subr.bf16.mxu0 %v755
        %1015 = vmatpush1.bf16.msra.mxu0 %v754
        %1016 = vmatprep.subr.bf16.mxu0 %v749
        %1017 = vmatpush1.bf16.msra.mxu0 %v748
        %1018 = vmatprep.subr.bf16.mxu0 %v743
        %1019 = vmatpush1.bf16.msra.mxu0 %v742
        %1020 = vmatprep.subr.bf16.mxu0 %v737
        %1021 = vmatpush1.bf16.msra.mxu0 %v736
        %1022 = vmatprep.subr.bf16.mxu0 %v731
        %1023 = vmatpush1.bf16.msra.mxu0 %v730
        %1024 = vmatprep.subr.bf16.mxu0 %v725
        %1025 = vmatpush1.bf16.msra.mxu0 %v724
        %1026 = vmatprep.subr.bf16.mxu0 %v719
        %1027 = vmatpush1.bf16.msra.mxu0 %v718
        %1028 = vmatprep.subr.bf16.mxu0 %v809
        %1029 = vmatpush2.bf16.msra.mxu0 %v808
        %1030 = vmatprep.subr.bf16.mxu0 %v803
        %1031 = vmatpush2.bf16.msra.mxu0 %v802
        %1032 = vmatprep.subr.bf16.mxu0 %v797
        %1033 = vmatpush2.bf16.msra.mxu0 %v796
        %1034 = vmatprep.subr.bf16.mxu0 %v791
        %1035 = vmatpush2.bf16.msra.mxu0 %v790
        %1036 = vmatprep.subr.bf16.mxu0 %v785
        %1037 = vmatpush2.bf16.msra.mxu0 %v784
        %1038 = vmatprep.subr.bf16.mxu0 %v779
        %1039 = vmatpush2.bf16.msra.mxu0 %v778
        %1040 = vmatprep.subr.bf16.mxu0 %v773
        %1041 = vmatpush2.bf16.msra.mxu0 %v772
        %1042 = vmatprep.subr.bf16.mxu0 %v767
        %1043 = vmatpush2.bf16.msra.mxu0 %v766
        %1044 = vmatprep.mubr.bf16.mxu0 %v295
        %1045 = vmatmul.mubr.bf16.gmra.mxu0 %v294
        %v1046 = vpop.f32.mrf.mxu0
        %v1047 = vadd.f32 %v415, %v1046
        %v1048 = vpop.f32.mrf.mxu0
        %v1049 = vadd.f32 %v419, %v1048
        %v1050 = vpop.f32.mrf.mxu0
        %v1051 = vadd.f32 %v415, %v1050
        %v1052 = vpop.f32.mrf.mxu0
        %v1053 = vadd.f32 %v419, %v1052
        %1054 = vmatprep.mubr.bf16.mxu0 %v297
        %1055 = vmatmul.mubr.bf16.gmra.mxu0 %v296
        %v1056 = vpop.f32.mrf.mxu0
        %v1057 = vadd.f32 %v415, %v1056
        %v1058 = vpop.f32.mrf.mxu0
        %v1059 = vadd.f32 %v419, %v1058
        %v1060 = vpop.f32.mrf.mxu0
        %v1061 = vadd.f32 %v415, %v1060
        %v1062 = vpop.f32.mrf.mxu0
        %v1063 = vadd.f32 %v419, %v1062
        %1064 = vdwg.mxu0
        %v1065 = vmul.f32 %v941, %v941
        %v1066 = vmul.f32 %v943, %v943
        %v1067 = vmul.f32 %v945, %v945
        %v1068 = vmul.f32 %v947, %v947
        %v1069 = vmul.f32 %v951, %v951
        %v1070 = vmul.f32 %v953, %v953
        %v1071 = vmul.f32 %v955, %v955
        %v1072 = vmul.f32 %v957, %v957
        %v1073 = vadd.f32 %v1065, %v1066
        %1074 = vadd.xlane.f32.xlu0 %v1073
        %v1075 = vpop.xlane.xlu0 %1074
        %v1076 = vadd.f32 %v1067, %v1068
        %1077 = vadd.xlane.f32.xlu0 %v1076
        %v1078 = vpop.xlane.xlu0 %1077
        %v1079 = vadd.f32 %v1069, %v1070
        %1080 = vadd.xlane.f32.xlu0 %v1079
        %v1081 = vpop.xlane.xlu0 %1080
        %v1082 = vadd.f32 %v1071, %v1072
        %1083 = vadd.xlane.f32.xlu0 %v1082
        %v1084 = vpop.xlane.xlu0 %1083
        %v1085 = vrsqrt.pop %v1075
        %v1086 = vmul.f32 %v1075, %v1085
        %vm1087 = vcmp.eq.f32.partialorder %v1075, inf
        %v1088 = vsel %vm1087, %v1075, %v1086
        %vm1089 = vcmp.eq.f32.partialorder %v1075, 0.0
        %v1090 = vand.u32 %v1075, 2147483648
        %v1091 = vsel %vm1089, %v1090, %v1088
        %v1092 = vrsqrt.pop %v1078
        %v1093 = vmul.f32 %v1078, %v1092
        %vm1094 = vcmp.eq.f32.partialorder %v1078, inf
        %v1095 = vsel %vm1094, %v1078, %v1093
        %vm1096 = vcmp.eq.f32.partialorder %v1078, 0.0
        %v1097 = vand.u32 %v1078, 2147483648
        %v1098 = vsel %vm1096, %v1097, %v1095
        %v1099 = vrsqrt.pop %v1081
        %v1100 = vmul.f32 %v1081, %v1099
        %vm1101 = vcmp.eq.f32.partialorder %v1081, inf
        %v1102 = vsel %vm1101, %v1081, %v1100
        %vm1103 = vcmp.eq.f32.partialorder %v1081, 0.0
        %v1104 = vand.u32 %v1081, 2147483648
        %v1105 = vsel %vm1103, %v1104, %v1102
        %v1106 = vrsqrt.pop %v1084
        %v1107 = vmul.f32 %v1084, %v1106
        %vm1108 = vcmp.eq.f32.partialorder %v1084, inf
        %v1109 = vsel %vm1108, %v1084, %v1107
        %vm1110 = vcmp.eq.f32.partialorder %v1084, 0.0
        %v1111 = vand.u32 %v1084, 2147483648
        %v1112 = vsel %vm1110, %v1111, %v1109
        %v1113 = vadd.f32 %v1091, 1e-05
        %v1114 = vadd.f32 %v1098, 1e-05
        %v1115 = vadd.f32 %v1105, 1e-05
        %v1116 = vadd.f32 %v1112, 1e-05
        %v1117 = vrcp.pop %v1113
        %v1118 = vrcp.pop %v1114
        %v1119 = vrcp.pop %v1115
        %v1120 = vrcp.pop %v1116
        %v1121 = vmul.f32 %v1117, 0.088388346
        %v1122 = vmul.f32 %v1118, 0.088388346
        %v1123 = vmul.f32 %v1119, 0.088388346
        %v1124 = vmul.f32 %v1120, 0.088388346
        %v1125 = vmul.f32 %v941, %v1121
        %v1126 = vmul.f32 %v943, %v1121
        %v1127 = vmul.f32 %v945, %v1122
        %v1128 = vmul.f32 %v947, %v1122
        %v1129 = vmul.f32 %v951, %v1123
        %v1130 = vmul.f32 %v953, %v1123
        %v1131 = vmul.f32 %v955, %v1124
        %v1132 = vmul.f32 %v957, %v1124
        %v1133 = vpack.c.bf16 %v1127, %v1125
        %v1134 = vpack.c.bf16 %v1128, %v1126
        %v1135 = vpack.c.bf16 %v1131, %v1129
        %v1136 = vpack.c.bf16 %v1132, %v1130
        %v1137 = vmul.f32 %v994, %v994
        %v1138 = vmul.f32 %v996, %v996
        %v1139 = vmul.f32 %v998, %v998
        %v1140 = vmul.f32 %v1000, %v1000
        %v1141 = vmul.f32 %v1004, %v1004
        %v1142 = vmul.f32 %v1006, %v1006
        %v1143 = vmul.f32 %v1008, %v1008
        %v1144 = vmul.f32 %v1010, %v1010
        %v1145 = vadd.f32 %v1137, %v1138
        %1146 = vadd.xlane.f32.xlu0 %v1145
        %v1147 = vpop.xlane.xlu0 %1146
        %v1148 = vadd.f32 %v1139, %v1140
        %1149 = vadd.xlane.f32.xlu0 %v1148
        %v1150 = vpop.xlane.xlu0 %1149
        %v1151 = vadd.f32 %v1141, %v1142
        %1152 = vadd.xlane.f32.xlu0 %v1151
        %v1153 = vpop.xlane.xlu0 %1152
        %v1154 = vadd.f32 %v1143, %v1144
        %1155 = vadd.xlane.f32.xlu0 %v1154
        %v1156 = vpop.xlane.xlu0 %1155
        %v1157 = vrsqrt.pop %v1147
        %v1158 = vmul.f32 %v1147, %v1157
        %vm1159 = vcmp.eq.f32.partialorder %v1147, inf
        %v1160 = vsel %vm1159, %v1147, %v1158
        %vm1161 = vcmp.eq.f32.partialorder %v1147, 0.0
        %v1162 = vand.u32 %v1147, 2147483648
        %v1163 = vsel %vm1161, %v1162, %v1160
        %v1164 = vrsqrt.pop %v1150
        %v1165 = vmul.f32 %v1150, %v1164
        %vm1166 = vcmp.eq.f32.partialorder %v1150, inf
        %v1167 = vsel %vm1166, %v1150, %v1165
        %vm1168 = vcmp.eq.f32.partialorder %v1150, 0.0
        %v1169 = vand.u32 %v1150, 2147483648
        %v1170 = vsel %vm1168, %v1169, %v1167
        %v1171 = vrsqrt.pop %v1153
        %v1172 = vmul.f32 %v1153, %v1171
        %vm1173 = vcmp.eq.f32.partialorder %v1153, inf
        %v1174 = vsel %vm1173, %v1153, %v1172
        %vm1175 = vcmp.eq.f32.partialorder %v1153, 0.0
        %v1176 = vand.u32 %v1153, 2147483648
        %v1177 = vsel %vm1175, %v1176, %v1174
        %v1178 = vrsqrt.pop %v1156
        %v1179 = vmul.f32 %v1156, %v1178
        %vm1180 = vcmp.eq.f32.partialorder %v1156, inf
        %v1181 = vsel %vm1180, %v1156, %v1179
        %vm1182 = vcmp.eq.f32.partialorder %v1156, 0.0
        %v1183 = vand.u32 %v1156, 2147483648
        %v1184 = vsel %vm1182, %v1183, %v1181
        %v1185 = vadd.f32 %v1163, 1e-05
        %v1186 = vadd.f32 %v1170, 1e-05
        %v1187 = vadd.f32 %v1177, 1e-05
        %v1188 = vadd.f32 %v1184, 1e-05
        %v1189 = vrcp.pop %v1185
        %v1190 = vrcp.pop %v1186
        %v1191 = vrcp.pop %v1187
        %v1192 = vrcp.pop %v1188
        %v1193 = vmul.f32 %v994, %v1189
        %v1194 = vmul.f32 %v996, %v1189
        %v1195 = vmul.f32 %v998, %v1190
        %v1196 = vmul.f32 %v1000, %v1190
        %v1197 = vmul.f32 %v1004, %v1191
        %v1198 = vmul.f32 %v1006, %v1191
        %v1199 = vmul.f32 %v1008, %v1192
        %v1200 = vmul.f32 %v1010, %v1192
        %v1201 = vpack.c.bf16 %v1195, %v1193
        %v1202 = vpack.c.bf16 %v1196, %v1194
        %v1203 = vpack.c.bf16 %v1199, %v1197
        %v1204 = vpack.c.bf16 %v1200, %v1198
        %v1205 = vmul.f32 %v1047, %v1047
        %v1206 = vmul.f32 %v1049, %v1049
        %v1207 = vmul.f32 %v1051, %v1051
        %v1208 = vmul.f32 %v1053, %v1053
        %v1209 = vmul.f32 %v1057, %v1057
        %v1210 = vmul.f32 %v1059, %v1059
        %v1211 = vmul.f32 %v1061, %v1061
        %v1212 = vmul.f32 %v1063, %v1063
        %v1213 = vadd.f32 %v1205, %v1206
        %1214 = vadd.xlane.f32.xlu0 %v1213
        %v1215 = vpop.xlane.xlu0 %1214
        %v1216 = vadd.f32 %v1207, %v1208
        %1217 = vadd.xlane.f32.xlu0 %v1216
        %v1218 = vpop.xlane.xlu0 %1217
        %v1219 = vadd.f32 %v1209, %v1210
        %1220 = vadd.xlane.f32.xlu0 %v1219
        %v1221 = vpop.xlane.xlu0 %1220
        %v1222 = vadd.f32 %v1211, %v1212
        %1223 = vadd.xlane.f32.xlu0 %v1222
        %v1224 = vpop.xlane.xlu0 %1223
        %v1225 = vrsqrt.pop %v1215
        %v1226 = vmul.f32 %v1215, %v1225
        %vm1227 = vcmp.eq.f32.partialorder %v1215, inf
        %v1228 = vsel %vm1227, %v1215, %v1226
        %vm1229 = vcmp.eq.f32.partialorder %v1215, 0.0
        %v1230 = vand.u32 %v1215, 2147483648
        %v1231 = vsel %vm1229, %v1230, %v1228
        %v1232 = vrsqrt.pop %v1218
        %v1233 = vmul.f32 %v1218, %v1232
        %vm1234 = vcmp.eq.f32.partialorder %v1218, inf
        %v1235 = vsel %vm1234, %v1218, %v1233
        %vm1236 = vcmp.eq.f32.partialorder %v1218, 0.0
        %v1237 = vand.u32 %v1218, 2147483648
        %v1238 = vsel %vm1236, %v1237, %v1235
        %v1239 = vrsqrt.pop %v1221
        %v1240 = vmul.f32 %v1221, %v1239
        %vm1241 = vcmp.eq.f32.partialorder %v1221, inf
        %v1242 = vsel %vm1241, %v1221, %v1240
        %vm1243 = vcmp.eq.f32.partialorder %v1221, 0.0
        %v1244 = vand.u32 %v1221, 2147483648
        %v1245 = vsel %vm1243, %v1244, %v1242
        %v1246 = vrsqrt.pop %v1224
        %v1247 = vmul.f32 %v1224, %v1246
        %vm1248 = vcmp.eq.f32.partialorder %v1224, inf
        %v1249 = vsel %vm1248, %v1224, %v1247
        %vm1250 = vcmp.eq.f32.partialorder %v1224, 0.0
        %v1251 = vand.u32 %v1224, 2147483648
        %v1252 = vsel %vm1250, %v1251, %v1249
        %v1253 = vadd.f32 %v1231, 1e-05
        %v1254 = vadd.f32 %v1238, 1e-05
        %v1255 = vadd.f32 %v1245, 1e-05
        %v1256 = vadd.f32 %v1252, 1e-05
        %v1257 = vrcp.pop %v1253
        %v1258 = vrcp.pop %v1254
        %v1259 = vrcp.pop %v1255
        %v1260 = vrcp.pop %v1256
        %v1261 = vmul.f32 %v1047, %v1257
        %v1262 = vmul.f32 %v1049, %v1257
        %v1263 = vmul.f32 %v1051, %v1258
        %v1264 = vmul.f32 %v1053, %v1258
        %v1265 = vmul.f32 %v1057, %v1259
        %v1266 = vmul.f32 %v1059, %v1259
        %v1267 = vmul.f32 %v1061, %v1260
        %v1268 = vmul.f32 %v1063, %v1260
        %v1269 = vpack.c.bf16 %v1263, %v1261
        %v1270 = vpack.c.bf16 %v1264, %v1262
        %v1271 = vpack.c.bf16 %v1267, %v1265
        %v1272 = vpack.c.bf16 %v1268, %v1266
        %1273 = vmatprep.subr.bf16.mxu0 0
        %1274 = vmatpush1.bf16.xpose.msra.mxu0 0
        %1275 = vmatprep.subr.bf16.mxu0 0
        %1276 = vmatpush1.bf16.xpose.msra.mxu0 0
        %1277 = vmatprep.subr.bf16.mxu0 0
        %1278 = vmatpush1.bf16.xpose.msra.mxu0 0
        %1279 = vmatprep.subr.bf16.mxu0 0
        %1280 = vmatpush1.bf16.xpose.msra.mxu0 0
        %1281 = vmatprep.subr.bf16.mxu0 0
        %1282 = vmatpush1.bf16.xpose.msra.mxu0 0
        %1283 = vmatprep.subr.bf16.mxu0 0
        %1284 = vmatpush1.bf16.xpose.msra.mxu0 0
        %1285 = vmatprep.subr.bf16.mxu0 0
        %1286 = vmatpush1.bf16.xpose.msra.mxu0 %v1203
        %1287 = vmatprep.subr.bf16.mxu0 0
        %1288 = vmatpush1.bf16.xpose.msra.mxu0 %v1201
        %1289 = vmatprep.subr.bf16.mxu0 0
        %1290 = vmatpush2.bf16.xpose.msra.mxu0 0
        %1291 = vmatprep.subr.bf16.mxu0 0
        %1292 = vmatpush2.bf16.xpose.msra.mxu0 0
        %1293 = vmatprep.subr.bf16.mxu0 0
        %1294 = vmatpush2.bf16.xpose.msra.mxu0 0
        %1295 = vmatprep.subr.bf16.mxu0 0
        %1296 = vmatpush2.bf16.xpose.msra.mxu0 0
        %1297 = vmatprep.subr.bf16.mxu0 0
        %1298 = vmatpush2.bf16.xpose.msra.mxu0 0
        %1299 = vmatprep.subr.bf16.mxu0 0
        %1300 = vmatpush2.bf16.xpose.msra.mxu0 0
        %1301 = vmatprep.subr.bf16.mxu0 0
        %1302 = vmatpush2.bf16.xpose.msra.mxu0 0
        %1303 = vmatprep.subr.bf16.mxu0 0
        %1304 = vmatpush2.bf16.xpose.msra.mxu0 0
        %1305 = vmatprep.mubr.bf16.mxu0 0
        %1306 = vmatmul.mubr.bf16.gmra.mxu0 %v1133
        %v1307 = vpop.f32.mrf.mxu0
        %v1308 = vadd.f32 0.0, %v1307
        %v1309 = vpop.f32.mrf.mxu0
        %v1310 = vpop.f32.mrf.mxu0
        %v1311 = vadd.f32 0.0, %v1310
        %v1312 = vpop.f32.mrf.mxu0
        %1313 = vmatprep.mubr.bf16.mxu0 0
        %1314 = vmatmul.mubr.bf16.gmra.mxu0 %v1135
        %v1315 = vpop.f32.mrf.mxu0
        %v1316 = vadd.f32 0.0, %v1315
        %v1317 = vpop.f32.mrf.mxu0
        %v1318 = vpop.f32.mrf.mxu0
        %v1319 = vadd.f32 0.0, %v1318
        %v1320 = vpop.f32.mrf.mxu0
        %1321 = vdwg.mxu0
        %v1322 = vmul.f32 %v1308, 1.442695
        %v1323 = vpow.pop %v1322
        %v1324 = vmul.f32 %v1311, 1.442695
        %v1325 = vpow.pop %v1324
        %v1326 = vmul.f32 %v1316, 1.442695
        %v1327 = vpow.pop %v1326
        %v1328 = vmul.f32 %v1319, 1.442695
        %v1329 = vpow.pop %v1328
        %vm1330 = vcmask 261120
        %v1331 = vsel %vm1330, %v1323, 0.0
        %1332 = vadd.xlane.f32.xlu0 %v1331
        %v1333 = vpop.xlane.xlu0 %1332
        %v1334 = vsel %vm1330, %v1325, 0.0
        %1335 = vadd.xlane.f32.xlu0 %v1334
        %v1336 = vpop.xlane.xlu0 %1335
        %v1337 = vsel %vm1330, %v1327, 0.0
        %1338 = vadd.xlane.f32.xlu0 %v1337
        %v1339 = vpop.xlane.xlu0 %1338
        %v1340 = vsel %vm1330, %v1329, 0.0
        %1341 = vadd.xlane.f32.xlu0 %v1340
        %v1342 = vpop.xlane.xlu0 %1341
        %v1343 = vrcp.pop %v1333
        %v1344 = vrcp.pop %v1336
        %v1345 = vrcp.pop %v1339
        %v1346 = vrcp.pop %v1342
        %v1347 = vpack.c.bf16 %v1325, %v1323
        %v1348 = vpack.c.bf16 %v1329, %v1327
        %v1350 = vsel %vm1330, %v1347, 0
        %v1353 = vsel %vm1330, %v1348, 0
        %1355 = vmatprep.subr.bf16.mxu0 0
        %1356 = vmatpush1.bf16.msra.mxu0 0
        %1357 = vmatprep.subr.bf16.mxu0 0
        %1358 = vmatpush1.bf16.msra.mxu0 0
        %1359 = vmatprep.subr.bf16.mxu0 0
        %1360 = vmatpush1.bf16.msra.mxu0 0
        %1361 = vmatprep.subr.bf16.mxu0 0
        %1362 = vmatpush1.bf16.msra.mxu0 0
        %1363 = vmatprep.subr.bf16.mxu0 0
        %1364 = vmatpush1.bf16.msra.mxu0 0
        %1365 = vmatprep.subr.bf16.mxu0 0
        %1366 = vmatpush1.bf16.msra.mxu0 0
        %1367 = vmatprep.subr.bf16.mxu0 0
        %1368 = vmatpush1.bf16.msra.mxu0 %v1271
        %1369 = vmatprep.subr.bf16.mxu0 0
        %1370 = vmatpush1.bf16.msra.mxu0 %v1269
        %1371 = vmatprep.subr.bf16.mxu0 0
        %1372 = vmatpush2.bf16.msra.mxu0 0
        %1373 = vmatprep.subr.bf16.mxu0 0
        %1374 = vmatpush2.bf16.msra.mxu0 0
        %1375 = vmatprep.subr.bf16.mxu0 0
        %1376 = vmatpush2.bf16.msra.mxu0 0
        %1377 = vmatprep.subr.bf16.mxu0 0
        %1378 = vmatpush2.bf16.msra.mxu0 0
        %1379 = vmatprep.subr.bf16.mxu0 0
        %1380 = vmatpush2.bf16.msra.mxu0 0
        %1381 = vmatprep.subr.bf16.mxu0 0
        %1382 = vmatpush2.bf16.msra.mxu0 0
        %1383 = vmatprep.subr.bf16.mxu0 0
        %1384 = vmatpush2.bf16.msra.mxu0 0
        %1385 = vmatprep.subr.bf16.mxu0 0
        %1386 = vmatpush2.bf16.msra.mxu0 0
        %1387 = vmatprep.mubr.bf16.mxu0 0
        %1388 = vmatmul.mubr.bf16.gmra.mxu0 %v1350
        %v1389 = vpop.f32.mrf.mxu0
        %v1390 = vadd.f32 0.0, %v1389
        %v1391 = vpop.f32.mrf.mxu0
        %v1392 = vpop.f32.mrf.mxu0
        %v1393 = vadd.f32 0.0, %v1392
        %v1394 = vpop.f32.mrf.mxu0
        %1395 = vmatprep.mubr.bf16.mxu0 0
        %1396 = vmatmul.mubr.bf16.gmra.mxu0 %v1353
        %v1397 = vpop.f32.mrf.mxu0
        %v1398 = vadd.f32 0.0, %v1397
        %v1399 = vpop.f32.mrf.mxu0
        %v1400 = vpop.f32.mrf.mxu0
        %v1401 = vadd.f32 0.0, %v1400
        %v1402 = vpop.f32.mrf.mxu0
        %1403 = vdwg.mxu0
        %v1404 = vmul.f32 %v1390, %v1343
        %v1405 = vmul.f32 %v1393, %v1344
        %v1406 = vmul.f32 %v1398, %v1345
        %v1407 = vmul.f32 %v1401, %v1346
        %v1408 = vpack.c.bf16 %v1405, %v1404
        %v1409 = vpack.c.bf16 %v1407, %v1406
        %v1410 = vld [vmem:[#allocation8] sm:$0xff]
        %v1411 = vld [vmem:[#allocation8 + $0x8] sm:$0xff]
        %v1412 = vld [vmem:[#allocation8 + $0x10] sm:$0xff]
        %v1413 = vld [vmem:[#allocation8 + $0x18] sm:$0xff]
        %v1414 = vld [vmem:[#allocation8 + $0x20] sm:$0xff]
        %v1415 = vld [vmem:[#allocation8 + $0x28] sm:$0xff]
        %v1416 = vld [vmem:[#allocation8 + $0x30] sm:$0xff]
        %v1417 = vld [vmem:[#allocation8 + $0x38] sm:$0xff]
        %v1418 = vld [vmem:[#allocation8 + $0x40] sm:$0xff]
        %v1419 = vld [vmem:[#allocation8 + $0x48] sm:$0xff]
        %v1420 = vld [vmem:[#allocation8 + $0x50] sm:$0xff]
        %v1421 = vld [vmem:[#allocation8 + $0x58] sm:$0xff]
        %v1422 = vld [vmem:[#allocation8 + $0x60] sm:$0xff]
        %v1423 = vld [vmem:[#allocation8 + $0x68] sm:$0xff]
        %v1424 = vld [vmem:[#allocation8 + $0x70] sm:$0xff]
        %v1425 = vld [vmem:[#allocation8 + $0x78] sm:$0xff]
        %1426 = vmatprep.subr.bf16.mxu0 0
        %1427 = vmatpush1.bf16.xpose.msra.mxu0 0
        %1428 = vmatprep.subr.bf16.mxu0 0
        %1429 = vmatpush1.bf16.xpose.msra.mxu0 0
        %1430 = vmatprep.subr.bf16.mxu0 0
        %1431 = vmatpush1.bf16.xpose.msra.mxu0 0
        %1432 = vmatprep.subr.bf16.mxu0 0
        %1433 = vmatpush1.bf16.xpose.msra.mxu0 0
        %1434 = vmatprep.subr.bf16.mxu0 0
        %1435 = vmatpush1.bf16.xpose.msra.mxu0 0
        %1436 = vmatprep.subr.bf16.mxu0 0
        %1437 = vmatpush1.bf16.xpose.msra.mxu0 0
        %1438 = vmatprep.subr.bf16.mxu0 0
        %1439 = vmatpush1.bf16.xpose.msra.mxu0 %v1204
        %1440 = vmatprep.subr.bf16.mxu0 0
        %1441 = vmatpush1.bf16.xpose.msra.mxu0 %v1202
        %1442 = vmatprep.subr.bf16.mxu0 0
        %1443 = vmatpush2.bf16.xpose.msra.mxu0 0
        %1444 = vmatprep.subr.bf16.mxu0 0
        %1445 = vmatpush2.bf16.xpose.msra.mxu0 0
        %1446 = vmatprep.subr.bf16.mxu0 0
        %1447 = vmatpush2.bf16.xpose.msra.mxu0 0
        %1448 = vmatprep.subr.bf16.mxu0 0
        %1449 = vmatpush2.bf16.xpose.msra.mxu0 0
        %1450 = vmatprep.subr.bf16.mxu0 0
        %1451 = vmatpush2.bf16.xpose.msra.mxu0 0
        %1452 = vmatprep.subr.bf16.mxu0 0
        %1453 = vmatpush2.bf16.xpose.msra.mxu0 0
        %1454 = vmatprep.subr.bf16.mxu0 0
        %1455 = vmatpush2.bf16.xpose.msra.mxu0 0
        %1456 = vmatprep.subr.bf16.mxu0 0
        %1457 = vmatpush2.bf16.xpose.msra.mxu0 0
        %1458 = vmatprep.mubr.bf16.mxu0 0
        %1459 = vmatmul.mubr.bf16.gmra.mxu0 %v1134
        %v1460 = vpop.f32.mrf.mxu0
        %v1461 = vadd.f32 0.0, %v1460
        %v1462 = vpop.f32.mrf.mxu0
        %v1463 = vpop.f32.mrf.mxu0
        %v1464 = vadd.f32 0.0, %v1463
        %v1465 = vpop.f32.mrf.mxu0
        %1466 = vmatprep.mubr.bf16.mxu0 0
        %1467 = vmatmul.mubr.bf16.gmra.mxu0 %v1136
        %v1468 = vpop.f32.mrf.mxu0
        %v1469 = vadd.f32 0.0, %v1468
        %v1470 = vpop.f32.mrf.mxu0
        %v1471 = vpop.f32.mrf.mxu0
        %v1472 = vadd.f32 0.0, %v1471
        %v1473 = vpop.f32.mrf.mxu0
        %1474 = vdwg.mxu0
        %v1475 = vmul.f32 %v1461, 1.442695
        %v1476 = vpow.pop %v1475
        %v1477 = vmul.f32 %v1464, 1.442695
        %v1478 = vpow.pop %v1477
        %v1479 = vmul.f32 %v1469, 1.442695
        %v1480 = vpow.pop %v1479
        %v1481 = vmul.f32 %v1472, 1.442695
        %v1482 = vpow.pop %v1481
        %v1483 = vsel %vm1330, %v1476, 0.0
        %1484 = vadd.xlane.f32.xlu0 %v1483
        %v1485 = vpop.xlane.xlu0 %1484
        %v1486 = vsel %vm1330, %v1478, 0.0
        %1487 = vadd.xlane.f32.xlu0 %v1486
        %v1488 = vpop.xlane.xlu0 %1487
        %v1489 = vsel %vm1330, %v1480, 0.0
        %1490 = vadd.xlane.f32.xlu0 %v1489
        %v1491 = vpop.xlane.xlu0 %1490
        %v1492 = vsel %vm1330, %v1482, 0.0
        %1493 = vadd.xlane.f32.xlu0 %v1492
        %v1494 = vpop.xlane.xlu0 %1493
        %v1495 = vrcp.pop %v1485
        %v1496 = vrcp.pop %v1488
        %v1497 = vrcp.pop %v1491
        %v1498 = vrcp.pop %v1494
        %v1499 = vpack.c.bf16 %v1478, %v1476
        %v1500 = vpack.c.bf16 %v1482, %v1480
        %v1502 = vsel %vm1330, %v1499, 0
        %v1505 = vsel %vm1330, %v1500, 0
        %1507 = vmatprep.subr.bf16.mxu0 0
        %1508 = vmatpush1.bf16.msra.mxu0 0
        %1509 = vmatprep.subr.bf16.mxu0 0
        %1510 = vmatpush1.bf16.msra.mxu0 0
        %1511 = vmatprep.subr.bf16.mxu0 0
        %1512 = vmatpush1.bf16.msra.mxu0 0
        %1513 = vmatprep.subr.bf16.mxu0 0
        %1514 = vmatpush1.bf16.msra.mxu0 0
        %1515 = vmatprep.subr.bf16.mxu0 0
        %1516 = vmatpush1.bf16.msra.mxu0 0
        %1517 = vmatprep.subr.bf16.mxu0 0
        %1518 = vmatpush1.bf16.msra.mxu0 0
        %1519 = vmatprep.subr.bf16.mxu0 0
        %1520 = vmatpush1.bf16.msra.mxu0 %v1272
        %1521 = vmatprep.subr.bf16.mxu0 0
        %1522 = vmatpush1.bf16.msra.mxu0 %v1270
        %1523 = vmatprep.subr.bf16.mxu0 0
        %1524 = vmatpush2.bf16.msra.mxu0 0
        %1525 = vmatprep.subr.bf16.mxu0 0
        %1526 = vmatpush2.bf16.msra.mxu0 0
        %1527 = vmatprep.subr.bf16.mxu0 0
        %1528 = vmatpush2.bf16.msra.mxu0 0
        %1529 = vmatprep.subr.bf16.mxu0 0
        %1530 = vmatpush2.bf16.msra.mxu0 0
        %1531 = vmatprep.subr.bf16.mxu0 0
        %1532 = vmatpush2.bf16.msra.mxu0 0
        %1533 = vmatprep.subr.bf16.mxu0 0
        %1534 = vmatpush2.bf16.msra.mxu0 0
        %1535 = vmatprep.subr.bf16.mxu0 0
        %1536 = vmatpush2.bf16.msra.mxu0 0
        %1537 = vmatprep.subr.bf16.mxu0 0
        %1538 = vmatpush2.bf16.msra.mxu0 0
        %1539 = vmatprep.mubr.bf16.mxu0 0
        %1540 = vmatmul.mubr.bf16.gmra.mxu0 %v1502
        %v1541 = vpop.f32.mrf.mxu0
        %v1542 = vadd.f32 0.0, %v1541
        %v1543 = vpop.f32.mrf.mxu0
        %v1544 = vpop.f32.mrf.mxu0
        %v1545 = vadd.f32 0.0, %v1544
        %v1546 = vpop.f32.mrf.mxu0
        %1547 = vmatprep.mubr.bf16.mxu0 0
        %1548 = vmatmul.mubr.bf16.gmra.mxu0 %v1505
        %v1549 = vpop.f32.mrf.mxu0
        %v1550 = vadd.f32 0.0, %v1549
        %v1551 = vpop.f32.mrf.mxu0
        %v1552 = vpop.f32.mrf.mxu0
        %v1553 = vadd.f32 0.0, %v1552
        %v1554 = vpop.f32.mrf.mxu0
        %1555 = vdwg.mxu0
        %v1556 = vmul.f32 %v1542, %v1495
        %v1557 = vmul.f32 %v1545, %v1496
        %v1558 = vmul.f32 %v1550, %v1497
        %v1559 = vmul.f32 %v1553, %v1498
        %v1560 = vpack.c.bf16 %v1557, %v1556
        %v1561 = vpack.c.bf16 %v1559, %v1558
        %v1562 = vld [vmem:[#allocation8 + $0x80] sm:$0xff]
        %v1563 = vld [vmem:[#allocation8 + $0x88] sm:$0xff]
        %v1564 = vld [vmem:[#allocation8 + $0x90] sm:$0xff]
        %v1565 = vld [vmem:[#allocation8 + $0x98] sm:$0xff]
        %v1566 = vld [vmem:[#allocation8 + $0xa0] sm:$0xff]
        %v1567 = vld [vmem:[#allocation8 + $0xa8] sm:$0xff]
        %v1568 = vld [vmem:[#allocation8 + $0xb0] sm:$0xff]
        %v1569 = vld [vmem:[#allocation8 + $0xb8] sm:$0xff]
        %v1570 = vld [vmem:[#allocation8 + $0xc0] sm:$0xff]
        %v1571 = vld [vmem:[#allocation8 + $0xc8] sm:$0xff]
        %v1572 = vld [vmem:[#allocation8 + $0xd0] sm:$0xff]
        %v1573 = vld [vmem:[#allocation8 + $0xd8] sm:$0xff]
        %v1574 = vld [vmem:[#allocation8 + $0xe0] sm:$0xff]
        %v1575 = vld [vmem:[#allocation8 + $0xe8] sm:$0xff]
        %v1576 = vld [vmem:[#allocation8 + $0xf0] sm:$0xff]
        %v1577 = vld [vmem:[#allocation8 + $0xf8] sm:$0xff]
        %v1594 = vunpack.c.l.b16 %v1562
        %v1595 = vunpack.c.h.b16 %v1562
        %v1596 = vunpack.c.l.b16 %v1563
        %v1597 = vunpack.c.h.b16 %v1563
        %v1598 = vunpack.c.l.b16 %v1564
        %v1599 = vunpack.c.h.b16 %v1564
        %v1600 = vunpack.c.l.b16 %v1565
        %v1601 = vunpack.c.h.b16 %v1565
        %v1602 = vunpack.c.l.b16 %v1566
        %v1603 = vunpack.c.h.b16 %v1566
        %v1604 = vunpack.c.l.b16 %v1567
        %v1605 = vunpack.c.h.b16 %v1567
        %v1606 = vunpack.c.l.b16 %v1568
        %v1607 = vunpack.c.h.b16 %v1568
        %v1608 = vunpack.c.l.b16 %v1569
        %v1609 = vunpack.c.h.b16 %v1569
        %v1610 = vunpack.c.l.b16 %v1570
        %v1611 = vunpack.c.h.b16 %v1570
        %v1612 = vunpack.c.l.b16 %v1571
        %v1613 = vunpack.c.h.b16 %v1571
        %v1614 = vunpack.c.l.b16 %v1572
        %v1615 = vunpack.c.h.b16 %v1572
        %v1616 = vunpack.c.l.b16 %v1573
        %v1617 = vunpack.c.h.b16 %v1573
        %v1618 = vunpack.c.l.b16 %v1574
        %v1619 = vunpack.c.h.b16 %v1574
        %v1620 = vunpack.c.l.b16 %v1575
        %v1621 = vunpack.c.h.b16 %v1575
        %v1622 = vunpack.c.l.b16 %v1576
        %v1623 = vunpack.c.h.b16 %v1576
        %v1624 = vunpack.c.l.b16 %v1577
        %v1625 = vunpack.c.h.b16 %v1577
        %v1626 = vpack.c.b16 %v1596, %v1594
        %v1627 = vpack.c.b16 %v1597, %v1595
        %v1628 = vpack.c.b16 %v1600, %v1598
        %v1629 = vpack.c.b16 %v1601, %v1599
        %v1630 = vpack.c.b16 %v1604, %v1602
        %v1631 = vpack.c.b16 %v1605, %v1603
        %v1632 = vpack.c.b16 %v1608, %v1606
        %v1633 = vpack.c.b16 %v1609, %v1607
        %v1634 = vpack.c.b16 %v1612, %v1610
        %v1635 = vpack.c.b16 %v1613, %v1611
        %v1636 = vpack.c.b16 %v1616, %v1614
        %v1637 = vpack.c.b16 %v1617, %v1615
        %v1638 = vpack.c.b16 %v1620, %v1618
        %v1639 = vpack.c.b16 %v1621, %v1619
        %v1640 = vpack.c.b16 %v1624, %v1622
        %v1641 = vpack.c.b16 %v1625, %v1623
        %1658 = vmatprep.subr.bf16.mxu0 %v1641
        %1659 = vmatpush1.bf16.msra.mxu0 %v1640
        %1660 = vmatprep.subr.bf16.mxu0 %v1639
        %1661 = vmatpush1.bf16.msra.mxu0 %v1638
        %1662 = vmatprep.subr.bf16.mxu0 %v1637
        %1663 = vmatpush1.bf16.msra.mxu0 %v1636
        %1664 = vmatprep.subr.bf16.mxu0 %v1635
        %1665 = vmatpush1.bf16.msra.mxu0 %v1634
        %1666 = vmatprep.subr.bf16.mxu0 %v1633
        %1667 = vmatpush1.bf16.msra.mxu0 %v1632
        %1668 = vmatprep.subr.bf16.mxu0 %v1631
        %1669 = vmatpush1.bf16.msra.mxu0 %v1630
        %1670 = vmatprep.subr.bf16.mxu0 %v1629
        %1671 = vmatpush1.bf16.msra.mxu0 %v1628
        %1672 = vmatprep.subr.bf16.mxu0 %v1627
        %1673 = vmatpush1.bf16.msra.mxu0 %v1626
        %1674 = vmatprep.subr.bf16.mxu0 0
        %1675 = vmatpush2.bf16.msra.mxu0 0
        %1676 = vmatprep.subr.bf16.mxu0 0
        %1677 = vmatpush2.bf16.msra.mxu0 0
        %1678 = vmatprep.subr.bf16.mxu0 0
        %1679 = vmatpush2.bf16.msra.mxu0 0
        %1680 = vmatprep.subr.bf16.mxu0 0
        %1681 = vmatpush2.bf16.msra.mxu0 0
        %1682 = vmatprep.subr.bf16.mxu0 0
        %1683 = vmatpush2.bf16.msra.mxu0 0
        %1684 = vmatprep.subr.bf16.mxu0 0
        %1685 = vmatpush2.bf16.msra.mxu0 0
        %1686 = vmatprep.subr.bf16.mxu0 0
        %1687 = vmatpush2.bf16.msra.mxu0 0
        %1688 = vmatprep.subr.bf16.mxu0 0
        %1689 = vmatpush2.bf16.msra.mxu0 0
        %1690 = vmatprep.mubr.bf16.mxu0 0
        %1691 = vmatmul.mubr.bf16.gmra.mxu0 %v1560
        %v1692 = vpop.f32.mrf.mxu0
        %v1693 = vadd.f32 0.0, %v1692
        %v1694 = vpop.f32.mrf.mxu0
        %v1695 = vadd.f32 0.0, %v1694
        %v1696 = vpop.f32.mrf.mxu0
        %v1697 = vadd.f32 0.0, %v1696
        %v1698 = vpop.f32.mrf.mxu0
        %v1699 = vadd.f32 0.0, %v1698
        %1700 = vmatprep.mubr.bf16.mxu0 0
        %1701 = vmatmul.mubr.bf16.gmra.mxu0 %v1561
        %v1702 = vpop.f32.mrf.mxu0
        %v1703 = vadd.f32 0.0, %v1702
        %v1704 = vpop.f32.mrf.mxu0
        %v1705 = vadd.f32 0.0, %v1704
        %v1706 = vpop.f32.mrf.mxu0
        %v1707 = vadd.f32 0.0, %v1706
        %v1708 = vpop.f32.mrf.mxu0
        %v1709 = vadd.f32 0.0, %v1708
        %1710 = vdwg.mxu0
        %v1727 = vunpack.c.l.b16 %v1410
        %v1728 = vunpack.c.h.b16 %v1410
        %v1729 = vunpack.c.l.b16 %v1411
        %v1730 = vunpack.c.h.b16 %v1411
        %v1731 = vunpack.c.l.b16 %v1412
        %v1732 = vunpack.c.h.b16 %v1412
        %v1733 = vunpack.c.l.b16 %v1413
        %v1734 = vunpack.c.h.b16 %v1413
        %v1735 = vunpack.c.l.b16 %v1414
        %v1736 = vunpack.c.h.b16 %v1414
        %v1737 = vunpack.c.l.b16 %v1415
        %v1738 = vunpack.c.h.b16 %v1415
        %v1739 = vunpack.c.l.b16 %v1416
        %v1740 = vunpack.c.h.b16 %v1416
        %v1741 = vunpack.c.l.b16 %v1417
        %v1742 = vunpack.c.h.b16 %v1417
        %v1743 = vunpack.c.l.b16 %v1418
        %v1744 = vunpack.c.h.b16 %v1418
        %v1745 = vunpack.c.l.b16 %v1419
        %v1746 = vunpack.c.h.b16 %v1419
        %v1747 = vunpack.c.l.b16 %v1420
        %v1748 = vunpack.c.h.b16 %v1420
        %v1749 = vunpack.c.l.b16 %v1421
        %v1750 = vunpack.c.h.b16 %v1421
        %v1751 = vunpack.c.l.b16 %v1422
        %v1752 = vunpack.c.h.b16 %v1422
        %v1753 = vunpack.c.l.b16 %v1423
        %v1754 = vunpack.c.h.b16 %v1423
        %v1755 = vunpack.c.l.b16 %v1424
        %v1756 = vunpack.c.h.b16 %v1424
        %v1757 = vunpack.c.l.b16 %v1425
        %v1758 = vunpack.c.h.b16 %v1425
        %v1759 = vpack.c.b16 %v1729, %v1727
        %v1760 = vpack.c.b16 %v1730, %v1728
        %v1761 = vpack.c.b16 %v1733, %v1731
        %v1762 = vpack.c.b16 %v1734, %v1732
        %v1763 = vpack.c.b16 %v1737, %v1735
        %v1764 = vpack.c.b16 %v1738, %v1736
        %v1765 = vpack.c.b16 %v1741, %v1739
        %v1766 = vpack.c.b16 %v1742, %v1740
        %v1767 = vpack.c.b16 %v1745, %v1743
        %v1768 = vpack.c.b16 %v1746, %v1744
        %v1769 = vpack.c.b16 %v1749, %v1747
        %v1770 = vpack.c.b16 %v1750, %v1748
        %v1771 = vpack.c.b16 %v1753, %v1751
        %v1772 = vpack.c.b16 %v1754, %v1752
        %v1773 = vpack.c.b16 %v1757, %v1755
        %v1774 = vpack.c.b16 %v1758, %v1756
        %1791 = vmatprep.subr.bf16.mxu0 %v1774
        %1792 = vmatpush1.bf16.msra.mxu0 %v1773
        %1793 = vmatprep.subr.bf16.mxu0 %v1772
        %1794 = vmatpush1.bf16.msra.mxu0 %v1771
        %1795 = vmatprep.subr.bf16.mxu0 %v1770
        %1796 = vmatpush1.bf16.msra.mxu0 %v1769
        %1797 = vmatprep.subr.bf16.mxu0 %v1768
        %1798 = vmatpush1.bf16.msra.mxu0 %v1767
        %1799 = vmatprep.subr.bf16.mxu0 %v1766
        %1800 = vmatpush1.bf16.msra.mxu0 %v1765
        %1801 = vmatprep.subr.bf16.mxu0 %v1764
        %1802 = vmatpush1.bf16.msra.mxu0 %v1763
        %1803 = vmatprep.subr.bf16.mxu0 %v1762
        %1804 = vmatpush1.bf16.msra.mxu0 %v1761
        %1805 = vmatprep.subr.bf16.mxu0 %v1760
        %1806 = vmatpush1.bf16.msra.mxu0 %v1759
        %1807 = vmatprep.subr.bf16.mxu0 0
        %1808 = vmatpush2.bf16.msra.mxu0 0
        %1809 = vmatprep.subr.bf16.mxu0 0
        %1810 = vmatpush2.bf16.msra.mxu0 0
        %1811 = vmatprep.subr.bf16.mxu0 0
        %1812 = vmatpush2.bf16.msra.mxu0 0
        %1813 = vmatprep.subr.bf16.mxu0 0
        %1814 = vmatpush2.bf16.msra.mxu0 0
        %1815 = vmatprep.subr.bf16.mxu0 0
        %1816 = vmatpush2.bf16.msra.mxu0 0
        %1817 = vmatprep.subr.bf16.mxu0 0
        %1818 = vmatpush2.bf16.msra.mxu0 0
        %1819 = vmatprep.subr.bf16.mxu0 0
        %1820 = vmatpush2.bf16.msra.mxu0 0
        %1821 = vmatprep.subr.bf16.mxu0 0
        %1822 = vmatpush2.bf16.msra.mxu0 0
        %1823 = vmatprep.mubr.bf16.mxu0 0
        %1824 = vmatmul.mubr.bf16.gmra.mxu0 %v1408
        %v1825 = vpop.f32.mrf.mxu0
        %v1826 = vadd.f32 %v1693, %v1825
        %v1827 = vpop.f32.mrf.mxu0
        %v1828 = vadd.f32 %v1695, %v1827
        %v1829 = vpop.f32.mrf.mxu0
        %v1830 = vadd.f32 %v1697, %v1829
        %v1831 = vpop.f32.mrf.mxu0
        %v1832 = vadd.f32 %v1699, %v1831
        %1833 = vmatprep.mubr.bf16.mxu0 0
        %1834 = vmatmul.mubr.bf16.gmra.mxu0 %v1409
        %v1835 = vpop.f32.mrf.mxu0
        %v1836 = vadd.f32 %v1703, %v1835
        %v1837 = vpop.f32.mrf.mxu0
        %v1838 = vadd.f32 %v1705, %v1837
        %v1839 = vpop.f32.mrf.mxu0
        %v1840 = vadd.f32 %v1707, %v1839
        %v1841 = vpop.f32.mrf.mxu0
        %v1842 = vadd.f32 %v1709, %v1841
        %1843 = vdwg.mxu0
        %v1844 = vld [vmem:[%s4] sm:$0x3]
        %v1846 = vlaneseq
        %v1847 = vshrl.u32 %v1846, 7
        %v1848 = vsub.s32 0, %v1847
        %v1849 = vrot.slane %v1844, %v1848
        %v1850 = vlaneseq
        %v1851 = vshrl.u32 %v1850, 7
        %v1852 = vsub.s32 1, %v1851
        %v1853 = vrot.slane %v1844, %v1852
        %v1856 = vadd.f32 %v1826, %v1849
        %v1857 = vadd.f32 %v1828, %v1853
        %v1858 = vadd.f32 %v1830, %v1849
        %v1859 = vadd.f32 %v1832, %v1853
        %v1860 = vadd.f32 %v1836, %v1849
        %v1861 = vadd.f32 %v1838, %v1853
        %v1862 = vadd.f32 %v1840, %v1849
        %v1863 = vadd.f32 %v1842, %v1853
        %v1864 = vmul.f32 %v1856, %v1856
        %v1865 = vmul.f32 %v1857, %v1857
        %v1866 = vmul.f32 %v1858, %v1858
        %v1867 = vmul.f32 %v1859, %v1859
        %v1868 = vmul.f32 %v1860, %v1860
        %v1869 = vmul.f32 %v1861, %v1861
        %v1870 = vmul.f32 %v1862, %v1862
        %v1871 = vmul.f32 %v1863, %v1863
        %v1872 = vadd.f32 %v1864, %v1865
        %1873 = vadd.xlane.f32.xlu0 %v1872
        %v1874 = vpop.xlane.xlu0 %1873
        %v1875 = vadd.f32 %v1866, %v1867
        %1876 = vadd.xlane.f32.xlu0 %v1875
        %v1877 = vpop.xlane.xlu0 %1876
        %v1878 = vadd.f32 %v1868, %v1869
        %1879 = vadd.xlane.f32.xlu0 %v1878
        %v1880 = vpop.xlane.xlu0 %1879
        %v1881 = vadd.f32 %v1870, %v1871
        %1882 = vadd.xlane.f32.xlu0 %v1881
        %v1883 = vpop.xlane.xlu0 %1882
        %v1884 = vrsqrt.pop %v1874
        %v1885 = vmul.f32 %v1874, %v1884
        %vm1886 = vcmp.eq.f32.partialorder %v1874, inf
        %v1887 = vsel %vm1886, %v1874, %v1885
        %vm1888 = vcmp.eq.f32.partialorder %v1874, 0.0
        %v1889 = vand.u32 %v1874, 2147483648
        %v1890 = vsel %vm1888, %v1889, %v1887
        %v1891 = vrsqrt.pop %v1877
        %v1892 = vmul.f32 %v1877, %v1891
        %vm1893 = vcmp.eq.f32.partialorder %v1877, inf
        %v1894 = vsel %vm1893, %v1877, %v1892
        %vm1895 = vcmp.eq.f32.partialorder %v1877, 0.0
        %v1896 = vand.u32 %v1877, 2147483648
        %v1897 = vsel %vm1895, %v1896, %v1894
        %v1898 = vrsqrt.pop %v1880
        %v1899 = vmul.f32 %v1880, %v1898
        %vm1900 = vcmp.eq.f32.partialorder %v1880, inf
        %v1901 = vsel %vm1900, %v1880, %v1899
        %vm1902 = vcmp.eq.f32.partialorder %v1880, 0.0
        %v1903 = vand.u32 %v1880, 2147483648
        %v1904 = vsel %vm1902, %v1903, %v1901
        %v1905 = vrsqrt.pop %v1883
        %v1906 = vmul.f32 %v1883, %v1905
        %vm1907 = vcmp.eq.f32.partialorder %v1883, inf
        %v1908 = vsel %vm1907, %v1883, %v1906
        %vm1909 = vcmp.eq.f32.partialorder %v1883, 0.0
        %v1910 = vand.u32 %v1883, 2147483648
        %v1911 = vsel %vm1909, %v1910, %v1908
        %v1912 = vadd.f32 %v1890, 1e-05
        %v1913 = vadd.f32 %v1897, 1e-05
        %v1914 = vadd.f32 %v1904, 1e-05
        %v1915 = vadd.f32 %v1911, 1e-05
        %v1916 = vrcp.pop %v1912
        %v1917 = vrcp.pop %v1913
        %v1918 = vrcp.pop %v1914
        %v1919 = vrcp.pop %v1915
        %v1920 = vmul.f32 %v1856, %v1916
        %v1921 = vmul.f32 %v1857, %v1916
        %v1922 = vmul.f32 %v1858, %v1917
        %v1923 = vmul.f32 %v1859, %v1917
        %v1924 = vmul.f32 %v1860, %v1918
        %v1925 = vmul.f32 %v1861, %v1918
        %v1926 = vmul.f32 %v1862, %v1919
        %v1927 = vmul.f32 %v1863, %v1919
        %1928 = vst [vmem:[%s284] sm:$0xff] %v1920
        %1929 = vst [vmem:[%s284 + $0x8] sm:$0xff] %v1921
        %1930 = vst [vmem:[%s284 + $0x10] sm:$0xff] %v1922
        %1931 = vst [vmem:[%s284 + $0x18] sm:$0xff] %v1923
        %1932 = vst [vmem:[%s284 + $0x20] sm:$0xff] %v1924
        %1933 = vst [vmem:[%s284 + $0x28] sm:$0xff] %v1925
        %1934 = vst [vmem:[%s284 + $0x30] sm:$0xff] %v1926
        %1935 = vst [vmem:[%s284 + $0x38] sm:$0xff] %v1927
        %s1936 = sand.u32 %s142, 1
        %s1937 = scalar_lea.sflag [#allocation4], %s1936
        %s1938 = sand.u32 %s142, 1
        %s1939 = smul.addr %s1938, 64
        %s1940 = scalar_lea.vmem [#allocation10], %s1939
        // Predicated region
        $region57: #{tpu_custom_call.1} parent=39 // pred_check
          %p1941 = pneg %p152
        $region58: #{tpu_custom_call.1} parent=39 // pred_check_branch
          %1943 = sbr.rel (%p1941) target = $region60
        $region59: #{tpu_custom_call.1} parent=39 // pred_region
          %s1945 = ssub.s32 1024, 1024
          %1946 = vsyncadd %s1937, %s1945
          %s1947 = smul.addr %s24, 8
          %s1948 = smul.addr %s1947, 128
          %s1949 = scalar_lea.hbm %s5, %s1948
          %s1950 = sshll.u32 %s1940, 4
          %s1951 = int_to_ptr.vmem [resolvable:$true] %s1950
          %1956 = dma.vmem_to_hbm [thread:$0]  %s1951, 1024, %s1949, %s1937, 256, 256, 16
        $region60: #{tpu_custom_call.1} parent=39 // pred_fallthru
          _
      $region40: #{tpu_custom_call.1} parent=5 // pred_fallthru
        _
      %p1957 = scmp.le.s32.totalorder 2, %s19
      // Predicated region
      $region61: #{tpu_custom_call.1} parent=5 // pred_check
        %p1958 = pneg %p1957
      $region62: #{tpu_custom_call.1} parent=5 // pred_check_branch
        %1960 = sbr.rel (%p1958) target = $region64
      $region63: #{tpu_custom_call.1} parent=5 // pred_region
        %s1961 = ssub.s32 %s19, 2
        // Predicated region
        $region65: #{tpu_custom_call.1} parent=63 // pred_check
          %p1962 = pneg %p158
        $region66: #{tpu_custom_call.1} parent=63 // pred_check_branch
          %1964 = sbr.rel (%p1962) target = $region68
        $region67: #{tpu_custom_call.1} parent=63 // pred_region
          %s1965 = sand.u32 %s143, 1
          %s1966 = scalar_lea.sflag [#allocation4], %s1965
          %s1967 = sand.u32 %s143, 1
          %s1968 = smul.addr %s1967, 64
          %s1969 = scalar_lea.vmem [#allocation10], %s1968
          %1970 = dma.done %s1966, 1024
        $region68: #{tpu_custom_call.1} parent=63 // pred_fallthru
          _
      $region64: #{tpu_custom_call.1} parent=5 // pred_fallthru
        _
    $region6: #{tpu_custom_call.1} parent=1 // loop_footer
      %s23 = sadd.s32 1, %s19
    $region7: #{tpu_custom_call.1} parent=1 // loop_footer_branch
      %18 = sbr.rel target = $region3
    $region8: #{tpu_custom_call.1} parent=1 // loop_exit
      _
    %1971 = vsyncpa [#allocation3], 1
    %s1972 = scalar_lea.sflag [#allocation3], 1
    %1973 = vsyncpa %s1972, 1
    %1974 = vsyncpa [#allocation6], 1
    %1975 = vsyncpa [#allocation9], 1
    %1976 = vsyncpa [#allocation4], 1
    %s1977 = scalar_lea.sflag [#allocation4], 1
    %1978 = vsyncpa %s1977, 1

</llo_original>
